<compile_context>
chip_gen: v6e
topology: v6e:2x2x1
jax: 0.10.0
libtpu: 0.0.40
codegen_flags: <defaults>
</compile_context>

<pallas_src>
import jax
import jax.numpy as jnp
from jax.experimental import pallas as pl
from jax.experimental.pallas import tpu as pltpu

EPS = 1e-5


# ------------------------------ fused kernel -------------------------------

def _make_block_kernel(H, W, Cin, Cout, s, same):
    """Build the fused WideResBlock kernel body for static shapes/flags."""
    Hout, Wout = H // s, W // s
    M = Hout * Wout
    Wq = (W + 1) // s + 1          # width of the column-phase-folded padded buffer
    Wph = W // s                   # width of each input column phase

    def kernel(*refs):
        phase_refs = refs[:s]
        (scale1_ref, shift1_ref, w1_ref,
         scale2_ref, shift2_ref, w2_ref) = refs[s:s + 6]
        i = s + 6
        if not same:
            wsc_ref = refs[i]
            i += 1
        out_ref = refs[i]
        f1_ref = refs[i + 1]       # (H+2, Wq, s*Cin) bf16: padded + folded preAct1(x)
        f2_ref = refs[i + 2]       # (Hout+2, Wout+2, Cout) bf16: padded preAct2(conv1)

        scale1 = scale1_ref[0].astype(jnp.float32)
        shift1 = shift1_ref[0].astype(jnp.float32)

        # ---- preAct1 (BN folded to scale/shift + ReLU) fused with halo build ----
        # Zero the halo buffer, then write the activated interior.  Column phase p
        # of x lands in lane-plane j = (p+1) % s at column offset (p+1)//s, so a
        # stride-s column access later is a plain (unstrided) slice.
        f1_ref[...] = jnp.zeros_like(f1_ref)
        for ph in range(s):
            xv = phase_refs[ph][0].astype(jnp.float32)          # (H, Wph, Cin)
            a = jnp.maximum(xv * scale1 + shift1, 0.0)          # f32 VPU math
            j, off = (ph + 1) % s, (ph + 1) // s
            f1_ref[1:H + 1, off:off + Wph, j * Cin:(j + 1) * Cin] = a.astype(jnp.bfloat16)

        # ---- conv1: 3x3, stride s, pad 1 -> ONE im2col matmul (K = 9*Cin) ----
        f1 = f1_ref[...]
        cols = []
        for dy in range(3):
            rows = f1[dy:dy + s * Hout]
            rows = rows.reshape(Hout, s, Wq, s * Cin)[:, 0]      # stride-s rows (free reshape)
            for dx in range(3):
                j, off = dx % s, dx // s
                patch = rows[:, off:off + Wout, j * Cin:(j + 1) * Cin]   # (Hout, Wout, Cin)
                cols.append(patch.reshape(M, Cin))
        y1 = jnp.dot(jnp.concatenate(cols, axis=-1), w1_ref[...],
                     preferred_element_type=jnp.float32)          # (M, Cout) f32 acc

        # ---- shortcut (stays in VMEM, never round-trips HBM) ----
        if same:
            shortcut = phase_refs[0][0].astype(jnp.float32).reshape(M, Cout)  # identity (s == 1)
        else:
            x0 = phase_refs[0][0].astype(jnp.float32)             # columns s*wo (phase 0)
            a0 = jnp.maximum(x0 * scale1 + shift1, 0.0)
            a0 = a0.reshape(Hout, s, Wout, Cin)[:, 0]             # rows s*ho (free reshape)
            shortcut = jnp.dot(a0.reshape(M, Cin).astype(jnp.bfloat16), wsc_ref[...],
                               preferred_element_type=jnp.float32)

        # ---- preAct2 fused; fill second halo buffer ----
        # TODO(synk): dropout (p > 0, training mode) not implemented; module default dropout=0.
        scale2 = scale2_ref[0].astype(jnp.float32)
        shift2 = shift2_ref[0].astype(jnp.float32)
        y2 = jnp.maximum(y1 * scale2 + shift2, 0.0)
        f2_ref[...] = jnp.zeros_like(f2_ref)
        f2_ref[1:Hout + 1, 1:Wout + 1, :] = y2.reshape(Hout, Wout, Cout).astype(jnp.bfloat16)

        # ---- conv2: 3x3, stride 1, pad 1 -> ONE im2col matmul + fused residual add ----
        f2 = f2_ref[...]
        cols2 = [f2[dy:dy + Hout, dx:dx + Wout, :].reshape(M, Cout)
                 for dy in range(3) for dx in range(3)]
        y3 = jnp.dot(jnp.concatenate(cols2, axis=-1), w2_ref[...],
                     preferred_element_type=jnp.float32)
        out_ref[0] = (y3 + shortcut).reshape(Hout, Wout, Cout).astype(out_ref.dtype)

    return kernel


# ------------------------------- public wrapper -----------------------------

def wide_res_block_pallas(x_nchw, p, stride):
    """Fused pre-activation WideResNet block (eval mode). NCHW in, NCHW out."""
    same = p["w_sc"] is None
    N, Cin, H, W = x_nchw.shape
    s = int(stride)
    Cout = p["w1"].shape[0]
    if H % s or W % s:
        raise ValueError("spatial dims must be divisible by the stride")
    if same and s != 1:
        # identity shortcut + spatial downsample would shape-mismatch (as in PyTorch)
        raise ValueError("same-channel block requires stride == 1")
    Hout, Wout = H // s, W // s
    Wq = (W + 1) // s + 1

    x = jnp.transpose(x_nchw, (0, 2, 3, 1)).astype(jnp.float32)      # NCHW -> NHWC (glue)

    # fold eval-mode BatchNorm into per-channel scale/shift (parameter glue)
    scale1 = p["gamma1"] / jnp.sqrt(p["var1"] + EPS)
    shift1 = p["beta1"] - p["mean1"] * scale1
    scale2 = p["gamma2"] / jnp.sqrt(p["var2"] + EPS)
    shift2 = p["beta2"] - p["mean2"] * scale2

    # column-phase split of the input (fuses with the layout transpose in XLA);
    # inside the kernel this turns the stride-s column access into a plain slice.
    phases = [x[:, :, ph::s, :] for ph in range(s)]

    # weights: OIHW -> HWIO -> flattened (9*Cin, Cout) im2col layout, bf16 MXU operands
    w1 = jnp.transpose(p["w1"], (2, 3, 1, 0)).reshape(9 * Cin, Cout).astype(jnp.bfloat16)
    w2 = jnp.transpose(p["w2"], (2, 3, 1, 0)).reshape(9 * Cout, Cout).astype(jnp.bfloat16)

    inputs = list(phases) + [
        scale1.reshape(1, Cin).astype(jnp.float32),
        shift1.reshape(1, Cin).astype(jnp.float32),
        w1,
        scale2.reshape(1, Cout).astype(jnp.float32),
        shift2.reshape(1, Cout).astype(jnp.float32),
        w2,
    ]
    in_specs = [pl.BlockSpec((1, H, W // s, Cin), lambda n: (n, 0, 0, 0)) for _ in range(s)]
    in_specs += [pl.BlockSpec((1, Cin), lambda n: (0, 0)),
                 pl.BlockSpec((1, Cin), lambda n: (0, 0)),
                 pl.BlockSpec((9 * Cin, Cout), lambda n: (0, 0)),
                 pl.BlockSpec((1, Cout), lambda n: (0, 0)),
                 pl.BlockSpec((1, Cout), lambda n: (0, 0)),
                 pl.BlockSpec((9 * Cout, Cout), lambda n: (0, 0))]
    if not same:
        w_sc = jnp.transpose(p["w_sc"][:, :, 0, 0]).astype(jnp.bfloat16)   # (Cin, Cout)
        inputs.append(w_sc)
        in_specs.append(pl.BlockSpec((Cin, Cout), lambda n: (0, 0)))

    out = pl.pallas_call(
        _make_block_kernel(H, W, Cin, Cout, s, same),
        out_shape=jax.ShapeDtypeStruct((N, Hout, Wout, Cout), jnp.float32),
        grid=(N,),
        in_specs=in_specs,
        out_specs=pl.BlockSpec((1, Hout, Wout, Cout), lambda n: (n, 0, 0, 0)),
        scratch_shapes=[pltpu.VMEM((H + 2, Wq, s * Cin), jnp.bfloat16),
                        pltpu.VMEM((Hout + 2, Wout + 2, Cout), jnp.bfloat16)],
        # NOTE: at real WRN widths, add a row-tile grid axis with a halo and an
        # explicit vmem_limit_bytes for v7x's 64 MiB VMEM; whole-image blocks are
        # fine at these sizes and keep this script portable.
        compiler_params=pltpu.CompilerParams(dimension_semantics=("parallel",)),
    )(*inputs)
    return jnp.transpose(out, (0, 3, 1, 2))                           # NHWC -> NCHW


# ------------------------------- parameters --------------------------------

def init_params(key, cin, cout):
    same = (cin == cout)
    ks = jax.random.split(key, 12)
    return {
        "gamma1": 1.0 + 0.1 * jax.random.normal(ks[0], (cin,), jnp.float32),
        "beta1": 0.1 * jax.random.normal(ks[1], (cin,), jnp.float32),
        "mean1": 0.1 * jax.random.normal(ks[2], (cin,), jnp.float32),
        "var1": 1.0 + 0.1 * jnp.abs(jax.random.normal(ks[3], (cin,), jnp.float32)),
        "w1": 0.1 * jax.random.normal(ks[4], (cout, cin, 3, 3), jnp.float32),   # OIHW
        "gamma2": 1.0 + 0.1 * jax.random.normal(ks[5], (cout,), jnp.float32),
        "beta2": 0.1 * jax.random.normal(ks[6], (cout,), jnp.float32),
        "mean2": 0.1 * jax.random.normal(ks[7], (cout,), jnp.float32),
        "var2": 1.0 + 0.1 * jnp.abs(jax.random.normal(ks[8], (cout,), jnp.float32)),
        "w2": 0.1 * jax.random.normal(ks[9], (cout, cout, 3, 3), jnp.float32),  # OIHW
        "w_sc": None if same else
                0.1 * jax.random.normal(ks[10], (cout, cin, 1, 1), jnp.float32),
    }


# ---------------------------- pure-JAX reference ----------------------------

def _ref_bn_relu(x, g, b, m, v):
    sc = (g / jnp.sqrt(v + EPS))[None, :, None, None]
    sh = (b - m * g / jnp.sqrt(v + EPS))[None, :, None, None]
    return jax.nn.relu(x * sc + sh)


def _ref_conv(x, w, stride, pad):
    return jax.lax.conv_general_dilated(
        x, w, (stride, stride), [(pad, pad), (pad, pad)],
        dimension_numbers=("NCHW", "OIHW", "NCHW"))


def wide_res_block_ref(x, p, stride):
    same = p["w_sc"] is None
    if same:
        shortcut = x
        a = _ref_bn_relu(x, p["gamma1"], p["beta1"], p["mean1"], p["var1"])
    else:
        a = _ref_bn_relu(x, p["gamma1"], p["beta1"], p["mean1"], p["var1"])
        shortcut = a
    y = _ref_conv(a, p["w1"], stride, 1)
    y = _ref_bn_relu(y, p["gamma2"], p["beta2"], p["mean2"], p["var2"])
    y = _ref_conv(y, p["w2"], 1, 1)
    if not same:
        shortcut = _ref_conv(shortcut, p["w_sc"], stride, 0)
    return y + shortcut


# ----------------------------------- main -----------------------------------

if __name__ == "__main__":
    key = jax.random.PRNGKey(0)
    kx, kp1, kp2 = jax.random.split(key, 3)

    x = jax.random.normal(kx, (2, 4, 16, 16), jnp.float32)  # NCHW
    fwd = jax.jit(wide_res_block_pallas, static_argnums=2)

    # tolerance sized for bf16 MXU operands with f32 accumulation vs. the f32 reference
    TOL = 3e-2

    # case 1: channel expansion + spatial downsample (in=4 -> out=8, stride=2)
    p1 = init_params(kp1, 4, 8)
    out1 = jax.block_until_ready(fwd(x, p1, 2))
    ref1 = wide_res_block_ref(x, p1, 2)
    assert out1.shape == (2, 8, 8, 8), out1.shape
    assert jnp.allclose(out1, ref1, atol=TOL, rtol=TOL), float(jnp.max(jnp.abs(out1 - ref1)))

    # case 2: identity shortcut (in=out=4, stride=1)
    p2 = init_params(kp2, 4, 4)
    out2 = jax.block_until_ready(fwd(x, p2, 1))
    ref2 = wide_res_block_ref(x, p2, 1)
    assert out2.shape == (2, 4, 16, 16), out2.shape
    assert jnp.allclose(out2, ref2, atol=TOL, rtol=TOL), float(jnp.max(jnp.abs(out2 - ref2)))

    print("KERNEL_OK")
</pallas_src>

<mosaic_0001>
module attributes {stable_mosaic.version = 11 : i64} {
  func.func @kernel(%arg0: i32, %arg1: memref<1x16x8x4xf32, #tpu.memory_space<vmem>>, %arg2: memref<1x16x8x4xf32, #tpu.memory_space<vmem>>, %arg3: memref<1x4xf32, #tpu.memory_space<vmem>>, %arg4: memref<1x4xf32, #tpu.memory_space<vmem>>, %arg5: memref<36x8xbf16, #tpu.memory_space<vmem>>, %arg6: memref<1x8xf32, #tpu.memory_space<vmem>>, %arg7: memref<1x8xf32, #tpu.memory_space<vmem>>, %arg8: memref<72x8xbf16, #tpu.memory_space<vmem>>, %arg9: memref<4x8xbf16, #tpu.memory_space<vmem>>, %arg10: memref<1x8x8x8xf32, #tpu.memory_space<vmem>>, %arg11: memref<18x9x8xbf16, #tpu.memory_space<vmem>>, %arg12: memref<10x10x8xbf16, #tpu.memory_space<vmem>>) attributes {dimension_semantics = [#tpu.dimension_semantics<parallel>], iteration_bounds = array<i64: 2>, scalar_prefetch = 0 : i64, scratch_operands = 2 : i64, tpu.core_type = #tpu.core_type<tc>, window_params = [{transform_indices = @transform_0, window_bounds = array<i64: 1, 16, 8, 4>}, {transform_indices = @transform_1, window_bounds = array<i64: 1, 16, 8, 4>}, {pipeline_mode = #tpu.pipeline_mode<synchronous>, transform_indices = @transform_2, window_bounds = array<i64: 1, 4>}, {pipeline_mode = #tpu.pipeline_mode<synchronous>, transform_indices = @transform_3, window_bounds = array<i64: 1, 4>}, {pipeline_mode = #tpu.pipeline_mode<synchronous>, transform_indices = @transform_4, window_bounds = array<i64: 36, 8>}, {pipeline_mode = #tpu.pipeline_mode<synchronous>, transform_indices = @transform_5, window_bounds = array<i64: 1, 8>}, {pipeline_mode = #tpu.pipeline_mode<synchronous>, transform_indices = @transform_6, window_bounds = array<i64: 1, 8>}, {pipeline_mode = #tpu.pipeline_mode<synchronous>, transform_indices = @transform_7, window_bounds = array<i64: 72, 8>}, {pipeline_mode = #tpu.pipeline_mode<synchronous>, transform_indices = @transform_8, window_bounds = array<i64: 4, 8>}, {transform_indices = @transform_9, window_bounds = array<i64: 1, 8, 8, 8>}]} {
    %c0 = arith.constant 0 : index
    %c0_0 = arith.constant 0 : index
    %0 = vector.load %arg3[%c0, %c0_0] : memref<1x4xf32, #tpu.memory_space<vmem>>, vector<1x4xf32>
    %1 = vector.shape_cast %0 : vector<1x4xf32> to vector<4xf32>
    %c0_1 = arith.constant 0 : index
    %c0_2 = arith.constant 0 : index
    %2 = vector.load %arg4[%c0_1, %c0_2] : memref<1x4xf32, #tpu.memory_space<vmem>>, vector<1x4xf32>
    %3 = vector.shape_cast %2 : vector<1x4xf32> to vector<4xf32>
    %cst = arith.constant 0.000000e+00 : bf16
    %4 = vector.broadcast %cst : bf16 to vector<18x9x8xbf16>
    %c0_3 = arith.constant 0 : index
    %c0_4 = arith.constant 0 : index
    %c0_5 = arith.constant 0 : index
    %5 = vector.load %arg11[%c0_3, %c0_4, %c0_5] : memref<18x9x8xbf16, #tpu.memory_space<vmem>>, vector<18x9x8xbf16>
    tpu.vector_store %arg11[%c0_3, %c0_4, %c0_5], %4 {strides = array<i32>} : memref<18x9x8xbf16, #tpu.memory_space<vmem>>, vector<18x9x8xbf16>,
    %c0_6 = arith.constant 0 : index
    %c0_7 = arith.constant 0 : index
    %c0_8 = arith.constant 0 : index
    %c0_9 = arith.constant 0 : index
    %6 = vector.load %arg1[%c0_6, %c0_7, %c0_8, %c0_9] : memref<1x16x8x4xf32, #tpu.memory_space<vmem>>, vector<1x16x8x4xf32>
    %7 = vector.shape_cast %6 : vector<1x16x8x4xf32> to vector<16x8x4xf32>
    %8 = vector.shape_cast %1 : vector<4xf32> to vector<1x1x4xf32>
    %9 = vector.broadcast %8 : vector<1x1x4xf32> to vector<16x8x4xf32>
    %10 = arith.mulf %7, %9 : vector<16x8x4xf32>
    %11 = vector.shape_cast %3 : vector<4xf32> to vector<1x1x4xf32>
    %12 = vector.broadcast %11 : vector<1x1x4xf32> to vector<16x8x4xf32>
    %13 = arith.addf %10, %12 : vector<16x8x4xf32>
    %cst_10 = arith.constant 0.000000e+00 : f32
    %14 = vector.broadcast %cst_10 : f32 to vector<16x8x4xf32>
    %15 = arith.maximumf %13, %14 : vector<16x8x4xf32>
    %16 = arith.truncf %15 : vector<16x8x4xf32> to vector<16x8x4xbf16>
    %c1 = arith.constant 1 : index
    %c0_11 = arith.constant 0 : index
    %c4 = arith.constant 4 : index
    %17 = vector.load %arg11[%c1, %c0_11, %c4] : memref<18x9x8xbf16, #tpu.memory_space<vmem>>, vector<16x8x4xbf16>
    tpu.vector_store %arg11[%c1, %c0_11, %c4], %16 {strides = array<i32>} : memref<18x9x8xbf16, #tpu.memory_space<vmem>>, vector<16x8x4xbf16>,
    %c0_12 = arith.constant 0 : index
    %c0_13 = arith.constant 0 : index
    %c0_14 = arith.constant 0 : index
    %c0_15 = arith.constant 0 : index
    %18 = vector.load %arg2[%c0_12, %c0_13, %c0_14, %c0_15] : memref<1x16x8x4xf32, #tpu.memory_space<vmem>>, vector<1x16x8x4xf32>
    %19 = vector.shape_cast %18 : vector<1x16x8x4xf32> to vector<16x8x4xf32>
    %20 = vector.shape_cast %1 : vector<4xf32> to vector<1x1x4xf32>
    %21 = vector.broadcast %20 : vector<1x1x4xf32> to vector<16x8x4xf32>
    %22 = arith.mulf %19, %21 : vector<16x8x4xf32>
    %23 = vector.shape_cast %3 : vector<4xf32> to vector<1x1x4xf32>
    %24 = vector.broadcast %23 : vector<1x1x4xf32> to vector<16x8x4xf32>
    %25 = arith.addf %22, %24 : vector<16x8x4xf32>
    %cst_16 = arith.constant 0.000000e+00 : f32
    %26 = vector.broadcast %cst_16 : f32 to vector<16x8x4xf32>
    %27 = arith.maximumf %25, %26 : vector<16x8x4xf32>
    %28 = arith.truncf %27 : vector<16x8x4xf32> to vector<16x8x4xbf16>
    %c1_17 = arith.constant 1 : index
    %c1_18 = arith.constant 1 : index
    %c0_19 = arith.constant 0 : index
    %29 = vector.load %arg11[%c1_17, %c1_18, %c0_19] : memref<18x9x8xbf16, #tpu.memory_space<vmem>>, vector<16x8x4xbf16>
    tpu.vector_store %arg11[%c1_17, %c1_18, %c0_19], %28 {strides = array<i32>} : memref<18x9x8xbf16, #tpu.memory_space<vmem>>, vector<16x8x4xbf16>,
    %c0_20 = arith.constant 0 : index
    %c0_21 = arith.constant 0 : index
    %c0_22 = arith.constant 0 : index
    %30 = vector.load %arg11[%c0_20, %c0_21, %c0_22] : memref<18x9x8xbf16, #tpu.memory_space<vmem>>, vector<18x9x8xbf16>
    %31 = vector.extract_strided_slice %30 {offsets = [0, 0, 0], sizes = [16, 9, 8], strides = [1, 1, 1]} : vector<18x9x8xbf16> to vector<16x9x8xbf16>
    %32 = vector.shape_cast %31 : vector<16x9x8xbf16> to vector<8x2x9x8xbf16>
    %33 = vector.extract_strided_slice %32 {offsets = [0, 0, 0, 0], sizes = [8, 1, 9, 8], strides = [1, 1, 1, 1]} : vector<8x2x9x8xbf16> to vector<8x1x9x8xbf16>
    %34 = vector.shape_cast %33 : vector<8x1x9x8xbf16> to vector<8x9x8xbf16>
    %35 = vector.extract_strided_slice %34 {offsets = [0, 0, 0], sizes = [8, 8, 4], strides = [1, 1, 1]} : vector<8x9x8xbf16> to vector<8x8x4xbf16>
    %36 = vector.shape_cast %35 : vector<8x8x4xbf16> to vector<64x4xbf16>
    %37 = vector.extract_strided_slice %34 {offsets = [0, 0, 4], sizes = [8, 8, 4], strides = [1, 1, 1]} : vector<8x9x8xbf16> to vector<8x8x4xbf16>
    %38 = vector.shape_cast %37 : vector<8x8x4xbf16> to vector<64x4xbf16>
    %39 = vector.extract_strided_slice %34 {offsets = [0, 1, 0], sizes = [8, 8, 4], strides = [1, 1, 1]} : vector<8x9x8xbf16> to vector<8x8x4xbf16>
    %40 = vector.shape_cast %39 : vector<8x8x4xbf16> to vector<64x4xbf16>
    %41 = vector.extract_strided_slice %30 {offsets = [1, 0, 0], sizes = [16, 9, 8], strides = [1, 1, 1]} : vector<18x9x8xbf16> to vector<16x9x8xbf16>
    %42 = vector.shape_cast %41 : vector<16x9x8xbf16> to vector<8x2x9x8xbf16>
    %43 = vector.extract_strided_slice %42 {offsets = [0, 0, 0, 0], sizes = [8, 1, 9, 8], strides = [1, 1, 1, 1]} : vector<8x2x9x8xbf16> to vector<8x1x9x8xbf16>
    %44 = vector.shape_cast %43 : vector<8x1x9x8xbf16> to vector<8x9x8xbf16>
    %45 = vector.extract_strided_slice %44 {offsets = [0, 0, 0], sizes = [8, 8, 4], strides = [1, 1, 1]} : vector<8x9x8xbf16> to vector<8x8x4xbf16>
    %46 = vector.shape_cast %45 : vector<8x8x4xbf16> to vector<64x4xbf16>
    %47 = vector.extract_strided_slice %44 {offsets = [0, 0, 4], sizes = [8, 8, 4], strides = [1, 1, 1]} : vector<8x9x8xbf16> to vector<8x8x4xbf16>
    %48 = vector.shape_cast %47 : vector<8x8x4xbf16> to vector<64x4xbf16>
    %49 = vector.extract_strided_slice %44 {offsets = [0, 1, 0], sizes = [8, 8, 4], strides = [1, 1, 1]} : vector<8x9x8xbf16> to vector<8x8x4xbf16>
    %50 = vector.shape_cast %49 : vector<8x8x4xbf16> to vector<64x4xbf16>
    %51 = vector.extract_strided_slice %30 {offsets = [2, 0, 0], sizes = [16, 9, 8], strides = [1, 1, 1]} : vector<18x9x8xbf16> to vector<16x9x8xbf16>
    %52 = vector.shape_cast %51 : vector<16x9x8xbf16> to vector<8x2x9x8xbf16>
    %53 = vector.extract_strided_slice %52 {offsets = [0, 0, 0, 0], sizes = [8, 1, 9, 8], strides = [1, 1, 1, 1]} : vector<8x2x9x8xbf16> to vector<8x1x9x8xbf16>
    %54 = vector.shape_cast %53 : vector<8x1x9x8xbf16> to vector<8x9x8xbf16>
    %55 = vector.extract_strided_slice %54 {offsets = [0, 0, 0], sizes = [8, 8, 4], strides = [1, 1, 1]} : vector<8x9x8xbf16> to vector<8x8x4xbf16>
    %56 = vector.shape_cast %55 : vector<8x8x4xbf16> to vector<64x4xbf16>
    %57 = vector.extract_strided_slice %54 {offsets = [0, 0, 4], sizes = [8, 8, 4], strides = [1, 1, 1]} : vector<8x9x8xbf16> to vector<8x8x4xbf16>
    %58 = vector.shape_cast %57 : vector<8x8x4xbf16> to vector<64x4xbf16>
    %59 = vector.extract_strided_slice %54 {offsets = [0, 1, 0], sizes = [8, 8, 4], strides = [1, 1, 1]} : vector<8x9x8xbf16> to vector<8x8x4xbf16>
    %60 = vector.shape_cast %59 : vector<8x8x4xbf16> to vector<64x4xbf16>
    %61 = tpu.concatenate %36, %38, %40, %46, %48, %50, %56, %58, %60 in 1 : vector<64x4xbf16>, vector<64x4xbf16>, vector<64x4xbf16>, vector<64x4xbf16>, vector<64x4xbf16>, vector<64x4xbf16>, vector<64x4xbf16>, vector<64x4xbf16>, vector<64x4xbf16> -> vector<64x36xbf16>
    %c0_23 = arith.constant 0 : index
    %c0_24 = arith.constant 0 : index
    %62 = vector.load %arg5[%c0_23, %c0_24] : memref<36x8xbf16, #tpu.memory_space<vmem>>, vector<36x8xbf16>
    %cst_25 = arith.constant dense<0.000000e+00> : vector<64x8xf32>
    %63 = tpu.matmul %61, %62, %cst_25 {dimension_numbers = #tpu.dot_dimension_numbers<[1], [0], [0], [1], [0, 0, 1, 1], [], []>} : vector<64x36xbf16>, vector<36x8xbf16>, vector<64x8xf32> -> vector<64x8xf32>
    %c0_26 = arith.constant 0 : index
    %c0_27 = arith.constant 0 : index
    %c0_28 = arith.constant 0 : index
    %c0_29 = arith.constant 0 : index
    %64 = vector.load %arg1[%c0_26, %c0_27, %c0_28, %c0_29] : memref<1x16x8x4xf32, #tpu.memory_space<vmem>>, vector<1x16x8x4xf32>
    %65 = vector.shape_cast %64 : vector<1x16x8x4xf32> to vector<16x8x4xf32>
    %66 = vector.shape_cast %1 : vector<4xf32> to vector<1x1x4xf32>
    %67 = vector.broadcast %66 : vector<1x1x4xf32> to vector<16x8x4xf32>
    %68 = arith.mulf %65, %67 : vector<16x8x4xf32>
    %69 = vector.shape_cast %3 : vector<4xf32> to vector<1x1x4xf32>
    %70 = vector.broadcast %69 : vector<1x1x4xf32> to vector<16x8x4xf32>
    %71 = arith.addf %68, %70 : vector<16x8x4xf32>
    %cst_30 = arith.constant 0.000000e+00 : f32
    %72 = vector.broadcast %cst_30 : f32 to vector<16x8x4xf32>
    %73 = arith.maximumf %71, %72 : vector<16x8x4xf32>
    %74 = vector.shape_cast %73 : vector<16x8x4xf32> to vector<8x2x8x4xf32>
    %75 = vector.extract_strided_slice %74 {offsets = [0, 0, 0, 0], sizes = [8, 1, 8, 4], strides = [1, 1, 1, 1]} : vector<8x2x8x4xf32> to vector<8x1x8x4xf32>
    %76 = vector.shape_cast %75 : vector<8x1x8x4xf32> to vector<8x8x4xf32>
    %77 = vector.shape_cast %76 : vector<8x8x4xf32> to vector<64x4xf32>
    %78 = arith.truncf %77 : vector<64x4xf32> to vector<64x4xbf16>
    %c0_31 = arith.constant 0 : index
    %c0_32 = arith.constant 0 : index
    %79 = vector.load %arg9[%c0_31, %c0_32] : memref<4x8xbf16, #tpu.memory_space<vmem>>, vector<4x8xbf16>
    %cst_33 = arith.constant dense<0.000000e+00> : vector<64x8xf32>
    %80 = tpu.matmul %78, %79, %cst_33 {dimension_numbers = #tpu.dot_dimension_numbers<[1], [0], [0], [1], [0, 0, 1, 1], [], []>} : vector<64x4xbf16>, vector<4x8xbf16>, vector<64x8xf32> -> vector<64x8xf32>
    %c0_34 = arith.constant 0 : index
    %c0_35 = arith.constant 0 : index
    %81 = vector.load %arg6[%c0_34, %c0_35] : memref<1x8xf32, #tpu.memory_space<vmem>>, vector<1x8xf32>
    %82 = vector.shape_cast %81 : vector<1x8xf32> to vector<8xf32>
    %c0_36 = arith.constant 0 : index
    %c0_37 = arith.constant 0 : index
    %83 = vector.load %arg7[%c0_36, %c0_37] : memref<1x8xf32, #tpu.memory_space<vmem>>, vector<1x8xf32>
    %84 = vector.shape_cast %83 : vector<1x8xf32> to vector<8xf32>
    %85 = vector.shape_cast %82 : vector<8xf32> to vector<1x8xf32>
    %86 = vector.broadcast %85 : vector<1x8xf32> to vector<64x8xf32>
    %87 = arith.mulf %63, %86 : vector<64x8xf32>
    %88 = vector.shape_cast %84 : vector<8xf32> to vector<1x8xf32>
    %89 = vector.broadcast %88 : vector<1x8xf32> to vector<64x8xf32>
    %90 = arith.addf %87, %89 : vector<64x8xf32>
    %cst_38 = arith.constant 0.000000e+00 : f32
    %91 = vector.broadcast %cst_38 : f32 to vector<64x8xf32>
    %92 = arith.maximumf %90, %91 : vector<64x8xf32>
    %cst_39 = arith.constant 0.000000e+00 : bf16
    %93 = vector.broadcast %cst_39 : bf16 to vector<10x10x8xbf16>
    %c0_40 = arith.constant 0 : index
    %c0_41 = arith.constant 0 : index
    %c0_42 = arith.constant 0 : index
    %94 = vector.load %arg12[%c0_40, %c0_41, %c0_42] : memref<10x10x8xbf16, #tpu.memory_space<vmem>>, vector<10x10x8xbf16>
    tpu.vector_store %arg12[%c0_40, %c0_41, %c0_42], %93 {strides = array<i32>} : memref<10x10x8xbf16, #tpu.memory_space<vmem>>, vector<10x10x8xbf16>,
    %95 = vector.shape_cast %92 : vector<64x8xf32> to vector<8x8x8xf32>
    %96 = arith.truncf %95 : vector<8x8x8xf32> to vector<8x8x8xbf16>
    %c1_43 = arith.constant 1 : index
    %c1_44 = arith.constant 1 : index
    %c0_45 = arith.constant 0 : index
    %97 = vector.load %arg12[%c1_43, %c1_44, %c0_45] : memref<10x10x8xbf16, #tpu.memory_space<vmem>>, vector<8x8x8xbf16>
    tpu.vector_store %arg12[%c1_43, %c1_44, %c0_45], %96 {strides = array<i32>} : memref<10x10x8xbf16, #tpu.memory_space<vmem>>, vector<8x8x8xbf16>,
    %c0_46 = arith.constant 0 : index
    %c0_47 = arith.constant 0 : index
    %c0_48 = arith.constant 0 : index
    %98 = vector.load %arg12[%c0_46, %c0_47, %c0_48] : memref<10x10x8xbf16, #tpu.memory_space<vmem>>, vector<10x10x8xbf16>
    %99 = vector.extract_strided_slice %98 {offsets = [0, 0, 0], sizes = [8, 8, 8], strides = [1, 1, 1]} : vector<10x10x8xbf16> to vector<8x8x8xbf16>
    %100 = vector.shape_cast %99 : vector<8x8x8xbf16> to vector<64x8xbf16>
    %101 = vector.extract_strided_slice %98 {offsets = [0, 1, 0], sizes = [8, 8, 8], strides = [1, 1, 1]} : vector<10x10x8xbf16> to vector<8x8x8xbf16>
    %102 = vector.shape_cast %101 : vector<8x8x8xbf16> to vector<64x8xbf16>
    %103 = vector.extract_strided_slice %98 {offsets = [0, 2, 0], sizes = [8, 8, 8], strides = [1, 1, 1]} : vector<10x10x8xbf16> to vector<8x8x8xbf16>
    %104 = vector.shape_cast %103 : vector<8x8x8xbf16> to vector<64x8xbf16>
    %105 = vector.extract_strided_slice %98 {offsets = [1, 0, 0], sizes = [8, 8, 8], strides = [1, 1, 1]} : vector<10x10x8xbf16> to vector<8x8x8xbf16>
    %106 = vector.shape_cast %105 : vector<8x8x8xbf16> to vector<64x8xbf16>
    %107 = vector.extract_strided_slice %98 {offsets = [1, 1, 0], sizes = [8, 8, 8], strides = [1, 1, 1]} : vector<10x10x8xbf16> to vector<8x8x8xbf16>
    %108 = vector.shape_cast %107 : vector<8x8x8xbf16> to vector<64x8xbf16>
    %109 = vector.extract_strided_slice %98 {offsets = [1, 2, 0], sizes = [8, 8, 8], strides = [1, 1, 1]} : vector<10x10x8xbf16> to vector<8x8x8xbf16>
    %110 = vector.shape_cast %109 : vector<8x8x8xbf16> to vector<64x8xbf16>
    %111 = vector.extract_strided_slice %98 {offsets = [2, 0, 0], sizes = [8, 8, 8], strides = [1, 1, 1]} : vector<10x10x8xbf16> to vector<8x8x8xbf16>
    %112 = vector.shape_cast %111 : vector<8x8x8xbf16> to vector<64x8xbf16>
    %113 = vector.extract_strided_slice %98 {offsets = [2, 1, 0], sizes = [8, 8, 8], strides = [1, 1, 1]} : vector<10x10x8xbf16> to vector<8x8x8xbf16>
    %114 = vector.shape_cast %113 : vector<8x8x8xbf16> to vector<64x8xbf16>
    %115 = vector.extract_strided_slice %98 {offsets = [2, 2, 0], sizes = [8, 8, 8], strides = [1, 1, 1]} : vector<10x10x8xbf16> to vector<8x8x8xbf16>
    %116 = vector.shape_cast %115 : vector<8x8x8xbf16> to vector<64x8xbf16>
    %117 = tpu.concatenate %100, %102, %104, %106, %108, %110, %112, %114, %116 in 1 : vector<64x8xbf16>, vector<64x8xbf16>, vector<64x8xbf16>, vector<64x8xbf16>, vector<64x8xbf16>, vector<64x8xbf16>, vector<64x8xbf16>, vector<64x8xbf16>, vector<64x8xbf16> -> vector<64x72xbf16>
    %c0_49 = arith.constant 0 : index
    %c0_50 = arith.constant 0 : index
    %118 = vector.load %arg8[%c0_49, %c0_50] : memref<72x8xbf16, #tpu.memory_space<vmem>>, vector<72x8xbf16>
    %cst_51 = arith.constant dense<0.000000e+00> : vector<64x8xf32>
    %119 = tpu.matmul %117, %118, %cst_51 {dimension_numbers = #tpu.dot_dimension_numbers<[1], [0], [0], [1], [0, 0, 1, 1], [], []>} : vector<64x72xbf16>, vector<72x8xbf16>, vector<64x8xf32> -> vector<64x8xf32>
    %120 = arith.addf %119, %80 : vector<64x8xf32>
    %121 = vector.shape_cast %120 : vector<64x8xf32> to vector<8x8x8xf32>
    %c0_52 = arith.constant 0 : index
    %c0_53 = arith.constant 0 : index
    %c0_54 = arith.constant 0 : index
    %c0_55 = arith.constant 0 : index
    %122 = vector.load %arg10[%c0_52, %c0_53, %c0_54, %c0_55] : memref<1x8x8x8xf32, #tpu.memory_space<vmem>>, vector<1x8x8x8xf32>
    %123 = vector.shape_cast %122 : vector<1x8x8x8xf32> to vector<8x8x8xf32>
    %124 = vector.shape_cast %121 : vector<8x8x8xf32> to vector<1x8x8x8xf32>
    tpu.vector_store %arg10[%c0_52, %c0_53, %c0_54, %c0_55], %124 {strides = array<i32>} : memref<1x8x8x8xf32, #tpu.memory_space<vmem>>, vector<1x8x8x8xf32>,
    return
  }
  func.func @transform_0(%arg0: i32) -> (i32, i32, i32, i32) {
    %c0_i32 = arith.constant 0 : i32
    %c0_i32_0 = arith.constant 0 : i32
    %c0_i32_1 = arith.constant 0 : i32
    %c0_i32_2 = arith.constant 0 : i32
    return %arg0, %c0_i32, %c0_i32_0, %c0_i32_1 : i32, i32, i32, i32
  }
  func.func @transform_1(%arg0: i32) -> (i32, i32, i32, i32) {
    %c0_i32 = arith.constant 0 : i32
    %c0_i32_0 = arith.constant 0 : i32
    %c0_i32_1 = arith.constant 0 : i32
    %c0_i32_2 = arith.constant 0 : i32
    return %arg0, %c0_i32, %c0_i32_0, %c0_i32_1 : i32, i32, i32, i32
  }
  func.func @transform_2(%arg0: i32) -> (i32, i32) {
    %c0_i32 = arith.constant 0 : i32
    %c0_i32_0 = arith.constant 0 : i32
    %c0_i32_1 = arith.constant 0 : i32
    return %c0_i32, %c0_i32_0 : i32, i32
  }
  func.func @transform_3(%arg0: i32) -> (i32, i32) {
    %c0_i32 = arith.constant 0 : i32
    %c0_i32_0 = arith.constant 0 : i32
    %c0_i32_1 = arith.constant 0 : i32
    return %c0_i32, %c0_i32_0 : i32, i32
  }
  func.func @transform_4(%arg0: i32) -> (i32, i32) {
    %c0_i32 = arith.constant 0 : i32
    %c0_i32_0 = arith.constant 0 : i32
    %c0_i32_1 = arith.constant 0 : i32
    return %c0_i32, %c0_i32_0 : i32, i32
  }
  func.func @transform_5(%arg0: i32) -> (i32, i32) {
    %c0_i32 = arith.constant 0 : i32
    %c0_i32_0 = arith.constant 0 : i32
    %c0_i32_1 = arith.constant 0 : i32
    return %c0_i32, %c0_i32_0 : i32, i32
  }
  func.func @transform_6(%arg0: i32) -> (i32, i32) {
    %c0_i32 = arith.constant 0 : i32
    %c0_i32_0 = arith.constant 0 : i32
    %c0_i32_1 = arith.constant 0 : i32
    return %c0_i32, %c0_i32_0 : i32, i32
  }
  func.func @transform_7(%arg0: i32) -> (i32, i32) {
    %c0_i32 = arith.constant 0 : i32
    %c0_i32_0 = arith.constant 0 : i32
    %c0_i32_1 = arith.constant 0 : i32
    return %c0_i32, %c0_i32_0 : i32, i32
  }
  func.func @transform_8(%arg0: i32) -> (i32, i32) {
    %c0_i32 = arith.constant 0 : i32
    %c0_i32_0 = arith.constant 0 : i32
    %c0_i32_1 = arith.constant 0 : i32
    return %c0_i32, %c0_i32_0 : i32, i32
  }
  func.func @transform_9(%arg0: i32) -> (i32, i32, i32, i32) {
    %c0_i32 = arith.constant 0 : i32
    %c0_i32_0 = arith.constant 0 : i32
    %c0_i32_1 = arith.constant 0 : i32
    %c0_i32_2 = arith.constant 0 : i32
    return %arg0, %c0_i32, %c0_i32_0, %c0_i32_1 : i32, i32, i32, i32
  }
}

</mosaic_0001>

<llo_original>
// kernel: wide_res_block_pallas.1
$region0: #{wide_res_block_pallas.1}
  #allocation0 [shape = 'u32[]', space=smem, size = 0x4, offset = 0x4, fixed_abs, tag = 'smem constant byte address 0x4 - core index']
  #allocation1 [shape = 'u32[144,128]{1,0:T(1,128)}', space=vmem, size = 0x12000, scoped, tag = 'internal scratch']
  #allocation2 [shape = 'bf16[18,9,8]{2,1,0:T(8,128)(2,1)}', space=vmem, size = 0x12000, scoped, tag = 'scratch operand']
  #allocation3 [shape = 'bf16[10,10,8]{2,1,0:T(8,128)(2,1)}', space=vmem, size = 0xa000, scoped, tag = 'scratch operand']
  %s0 = inlined_call_operand.vmem [shape: f32[2,16,8,4], index: 0, kind: input, shape index: {}]
  %s1 = inlined_call_operand.vmem [shape: f32[2,16,8,4], index: 1, kind: input, shape index: {}]
  %s2 = inlined_call_operand.vmem [shape: f32[1,4], index: 2, kind: input, shape index: {}]
  %s3 = inlined_call_operand.vmem [shape: f32[1,4], index: 3, kind: input, shape index: {}]
  %s4 = inlined_call_operand.vmem [shape: bf16[36,8], index: 4, kind: input, shape index: {}]
  %s5 = inlined_call_operand.vmem [shape: f32[1,8], index: 5, kind: input, shape index: {}]
  %s6 = inlined_call_operand.vmem [shape: f32[1,8], index: 6, kind: input, shape index: {}]
  %s7 = inlined_call_operand.vmem [shape: bf16[72,8], index: 7, kind: input, shape index: {}]
  %s8 = inlined_call_operand.vmem [shape: bf16[4,8], index: 8, kind: input, shape index: {}]
  %s9 = inlined_call_operand.vmem [shape: f32[2,8,8,8], index: 9, kind: output, shape index: {}]
  %s10 = sld [smem:[#allocation0]]
  $region69: #{wide_res_block_pallas.1} parent=0
    _
  %s12 = ssub.s32 1, %s10
  %s13 = scalar_select 0, %s12, %s10
  loop: start=0, step=1, limit=4
  $region2: #{wide_res_block_pallas.1} parent=0 // loop_pre_header
    _
  $region3: #{wide_res_block_pallas.1} parent=0 // loop_header
    %s15 = sphi 0, %s19
    %p16 = scmp.ge.s32.totalorder %s15, 4
    %s25 = sphi 0, %s27
    %s28 = sphi 0, %s25
    %s29 = sphi 0, %s28
    %s45 = sphi 0, %s29
    %s51 = sphi 0, %s53
    %s54 = sphi 0, %s51
    %s55 = sphi 0, %s54
    %s71 = sphi 0, %s55
    %s75 = sphi 0, %s75
    %s77 = sphi 0, %s75
    %s78 = sphi 0, %s77
    %s92 = sphi 0, %s78
    %s96 = sphi 0, %s96
    %s98 = sphi 0, %s96
    %s99 = sphi 0, %s98
    %s113 = sphi 0, %s99
    %s117 = sphi 0, %s117
    %s119 = sphi 0, %s117
    %s120 = sphi 0, %s119
    %s134 = sphi 0, %s120
    %s138 = sphi 0, %s138
    %s140 = sphi 0, %s138
    %s141 = sphi 0, %s140
    %s155 = sphi 0, %s141
    %s159 = sphi 0, %s159
    %s161 = sphi 0, %s159
    %s162 = sphi 0, %s161
    %s176 = sphi 0, %s162
    %s180 = sphi 0, %s180
    %s182 = sphi 0, %s180
    %s183 = sphi 0, %s182
    %s197 = sphi 0, %s183
    %s201 = sphi 0, %s201
    %s203 = sphi 0, %s201
    %s204 = sphi 0, %s203
    %s218 = sphi 0, %s204
    %s224 = sphi 0, %s226
    %s227 = sphi 0, %s224
    %s228 = sphi 0, %s227
    %s244 = sphi 0, %s228
  $region4: #{wide_res_block_pallas.1} parent=0 // loop_header_branch
    %18 = sbr.rel (%p16) target = $region8
  $region5: #{wide_res_block_pallas.1} parent=0 // loop_body
    %s20 = ssub.s32 %s15, 1
    %s21 = ssub.s32 %s15, 2
    %s22 = sadd.s32 %s15, 1
    %s23 = ssub.s32 %s15, %s22
    %p24 = scmp.eq.s32.totalorder %s23, 0
    %s26 = sadd.s32 %s25, 1
    %s27 = scalar_select %p24, %s25, %s26
    %p30 = pneg %p24
    %p31 = scmp.eq.s32.totalorder %s15, 1
    %p32 = por %p30, %p31
    %p33 = scmp.ne.s32.totalorder %s25, %s28
    %p34 = scmp.eq.s32.totalorder %s15, 0
    %p35 = por %p33, %p34
    %p36 = scmp.ne.s32.totalorder %s25, %s28
    %p37 = scmp.eq.s32.totalorder %s20, 1
    %p38 = por %p36, %p37
    %p39 = scmp.ne.s32.totalorder %s28, %s29
    %p40 = scmp.eq.s32.totalorder %s20, 0
    %p41 = por %p39, %p40
    %p42 = scmp.ne.s32.totalorder %s28, %s29
    %p43 = scmp.eq.s32.totalorder %s21, 1
    %p44 = por %p42, %p43
    %p46 = scmp.ne.s32.totalorder %s29, %s45
    %p47 = scmp.eq.s32.totalorder %s21, 0
    %p48 = por %p46, %p47
    %s49 = ssub.s32 %s15, %s22
    %p50 = scmp.eq.s32.totalorder %s49, 0
    %s52 = sadd.s32 %s51, 1
    %s53 = scalar_select %p50, %s51, %s52
    %p56 = pneg %p50
    %p57 = scmp.eq.s32.totalorder %s15, 1
    %p58 = por %p56, %p57
    %p59 = scmp.ne.s32.totalorder %s51, %s54
    %p60 = scmp.eq.s32.totalorder %s15, 0
    %p61 = por %p59, %p60
    %p62 = scmp.ne.s32.totalorder %s51, %s54
    %p63 = scmp.eq.s32.totalorder %s20, 1
    %p64 = por %p62, %p63
    %p65 = scmp.ne.s32.totalorder %s54, %s55
    %p66 = scmp.eq.s32.totalorder %s20, 0
    %p67 = por %p65, %p66
    %p68 = scmp.ne.s32.totalorder %s54, %s55
    %p69 = scmp.eq.s32.totalorder %s21, 1
    %p70 = por %p68, %p69
    %p72 = scmp.ne.s32.totalorder %s55, %s71
    %p73 = scmp.eq.s32.totalorder %s21, 0
    %p74 = por %p72, %p73
    %s76 = sadd.s32 %s75, 1
    %p79 = scmp.eq.s32.totalorder %s15, 1
    %p80 = scmp.ne.s32.totalorder %s75, %s77
    %p81 = scmp.eq.s32.totalorder %s15, 0
    %p82 = por %p80, %p81
    %p83 = scmp.ne.s32.totalorder %s75, %s77
    %p84 = scmp.eq.s32.totalorder %s20, 1
    %p85 = por %p83, %p84
    %p86 = scmp.ne.s32.totalorder %s77, %s78
    %p87 = scmp.eq.s32.totalorder %s20, 0
    %p88 = por %p86, %p87
    %p89 = scmp.ne.s32.totalorder %s77, %s78
    %p90 = scmp.eq.s32.totalorder %s21, 1
    %p91 = por %p89, %p90
    %p93 = scmp.ne.s32.totalorder %s78, %s92
    %p94 = scmp.eq.s32.totalorder %s21, 0
    %p95 = por %p93, %p94
    %s97 = sadd.s32 %s96, 1
    %p100 = scmp.eq.s32.totalorder %s15, 1
    %p101 = scmp.ne.s32.totalorder %s96, %s98
    %p102 = scmp.eq.s32.totalorder %s15, 0
    %p103 = por %p101, %p102
    %p104 = scmp.ne.s32.totalorder %s96, %s98
    %p105 = scmp.eq.s32.totalorder %s20, 1
    %p106 = por %p104, %p105
    %p107 = scmp.ne.s32.totalorder %s98, %s99
    %p108 = scmp.eq.s32.totalorder %s20, 0
    %p109 = por %p107, %p108
    %p110 = scmp.ne.s32.totalorder %s98, %s99
    %p111 = scmp.eq.s32.totalorder %s21, 1
    %p112 = por %p110, %p111
    %p114 = scmp.ne.s32.totalorder %s99, %s113
    %p115 = scmp.eq.s32.totalorder %s21, 0
    %p116 = por %p114, %p115
    %s118 = sadd.s32 %s117, 1
    %p121 = scmp.eq.s32.totalorder %s15, 1
    %p122 = scmp.ne.s32.totalorder %s117, %s119
    %p123 = scmp.eq.s32.totalorder %s15, 0
    %p124 = por %p122, %p123
    %p125 = scmp.ne.s32.totalorder %s117, %s119
    %p126 = scmp.eq.s32.totalorder %s20, 1
    %p127 = por %p125, %p126
    %p128 = scmp.ne.s32.totalorder %s119, %s120
    %p129 = scmp.eq.s32.totalorder %s20, 0
    %p130 = por %p128, %p129
    %p131 = scmp.ne.s32.totalorder %s119, %s120
    %p132 = scmp.eq.s32.totalorder %s21, 1
    %p133 = por %p131, %p132
    %p135 = scmp.ne.s32.totalorder %s120, %s134
    %p136 = scmp.eq.s32.totalorder %s21, 0
    %p137 = por %p135, %p136
    %s139 = sadd.s32 %s138, 1
    %p142 = scmp.eq.s32.totalorder %s15, 1
    %p143 = scmp.ne.s32.totalorder %s138, %s140
    %p144 = scmp.eq.s32.totalorder %s15, 0
    %p145 = por %p143, %p144
    %p146 = scmp.ne.s32.totalorder %s138, %s140
    %p147 = scmp.eq.s32.totalorder %s20, 1
    %p148 = por %p146, %p147
    %p149 = scmp.ne.s32.totalorder %s140, %s141
    %p150 = scmp.eq.s32.totalorder %s20, 0
    %p151 = por %p149, %p150
    %p152 = scmp.ne.s32.totalorder %s140, %s141
    %p153 = scmp.eq.s32.totalorder %s21, 1
    %p154 = por %p152, %p153
    %p156 = scmp.ne.s32.totalorder %s141, %s155
    %p157 = scmp.eq.s32.totalorder %s21, 0
    %p158 = por %p156, %p157
    %s160 = sadd.s32 %s159, 1
    %p163 = scmp.eq.s32.totalorder %s15, 1
    %p164 = scmp.ne.s32.totalorder %s159, %s161
    %p165 = scmp.eq.s32.totalorder %s15, 0
    %p166 = por %p164, %p165
    %p167 = scmp.ne.s32.totalorder %s159, %s161
    %p168 = scmp.eq.s32.totalorder %s20, 1
    %p169 = por %p167, %p168
    %p170 = scmp.ne.s32.totalorder %s161, %s162
    %p171 = scmp.eq.s32.totalorder %s20, 0
    %p172 = por %p170, %p171
    %p173 = scmp.ne.s32.totalorder %s161, %s162
    %p174 = scmp.eq.s32.totalorder %s21, 1
    %p175 = por %p173, %p174
    %p177 = scmp.ne.s32.totalorder %s162, %s176
    %p178 = scmp.eq.s32.totalorder %s21, 0
    %p179 = por %p177, %p178
    %s181 = sadd.s32 %s180, 1
    %p184 = scmp.eq.s32.totalorder %s15, 1
    %p185 = scmp.ne.s32.totalorder %s180, %s182
    %p186 = scmp.eq.s32.totalorder %s15, 0
    %p187 = por %p185, %p186
    %p188 = scmp.ne.s32.totalorder %s180, %s182
    %p189 = scmp.eq.s32.totalorder %s20, 1
    %p190 = por %p188, %p189
    %p191 = scmp.ne.s32.totalorder %s182, %s183
    %p192 = scmp.eq.s32.totalorder %s20, 0
    %p193 = por %p191, %p192
    %p194 = scmp.ne.s32.totalorder %s182, %s183
    %p195 = scmp.eq.s32.totalorder %s21, 1
    %p196 = por %p194, %p195
    %p198 = scmp.ne.s32.totalorder %s183, %s197
    %p199 = scmp.eq.s32.totalorder %s21, 0
    %p200 = por %p198, %p199
    %s202 = sadd.s32 %s201, 1
    %p205 = scmp.eq.s32.totalorder %s15, 1
    %p206 = scmp.ne.s32.totalorder %s201, %s203
    %p207 = scmp.eq.s32.totalorder %s15, 0
    %p208 = por %p206, %p207
    %p209 = scmp.ne.s32.totalorder %s201, %s203
    %p210 = scmp.eq.s32.totalorder %s20, 1
    %p211 = por %p209, %p210
    %p212 = scmp.ne.s32.totalorder %s203, %s204
    %p213 = scmp.eq.s32.totalorder %s20, 0
    %p214 = por %p212, %p213
    %p215 = scmp.ne.s32.totalorder %s203, %s204
    %p216 = scmp.eq.s32.totalorder %s21, 1
    %p217 = por %p215, %p216
    %p219 = scmp.ne.s32.totalorder %s204, %s218
    %p220 = scmp.eq.s32.totalorder %s21, 0
    %p221 = por %p219, %p220
    %s222 = ssub.s32 %s15, %s22
    %p223 = scmp.eq.s32.totalorder %s222, 0
    %s225 = sadd.s32 %s224, 1
    %s226 = scalar_select %p223, %s224, %s225
    %p229 = pneg %p223
    %p230 = scmp.eq.s32.totalorder %s15, 1
    %p231 = por %p229, %p230
    %p232 = scmp.ne.s32.totalorder %s224, %s227
    %p233 = scmp.eq.s32.totalorder %s15, 0
    %p234 = por %p232, %p233
    %p235 = scmp.ne.s32.totalorder %s224, %s227
    %p236 = scmp.eq.s32.totalorder %s20, 1
    %p237 = por %p235, %p236
    %p238 = scmp.ne.s32.totalorder %s227, %s228
    %p239 = scmp.eq.s32.totalorder %s20, 0
    %p240 = por %p238, %p239
    %p241 = scmp.ne.s32.totalorder %s227, %s228
    %p242 = scmp.eq.s32.totalorder %s21, 1
    %p243 = por %p241, %p242
    %p245 = scmp.ne.s32.totalorder %s228, %s244
    %p246 = scmp.eq.s32.totalorder %s21, 0
    %p247 = por %p245, %p246
    %p248 = scmp.le.s32.totalorder 1, %s15
    %p249 = scmp.lt.s32.totalorder %s15, 3
    %p250 = pnand %p248, %p249
    %p251 = pneg %p250
    // Predicated region
    $region9: #{wide_res_block_pallas.1} parent=5 // pred_check
      _
    $region10: #{wide_res_block_pallas.1} parent=5 // pred_check_branch
      %253 = sbr.rel (%p250) target = $region12
    $region11: #{wide_res_block_pallas.1} parent=5 // pred_region
      %s254 = ssub.s32 %s15, 1
      // Predicated region
      $region13: #{wide_res_block_pallas.1} parent=11 // pred_check
        %p255 = pneg %p88
      $region14: #{wide_res_block_pallas.1} parent=11 // pred_check_branch
        %257 = sbr.rel (%p255) target = $region16
      $region15: #{wide_res_block_pallas.1} parent=11 // pred_region
        _
      $region16: #{wide_res_block_pallas.1} parent=11 // pred_fallthru
        _
      // Predicated region
      $region17: #{wide_res_block_pallas.1} parent=11 // pred_check
        %p258 = pneg %p109
      $region18: #{wide_res_block_pallas.1} parent=11 // pred_check_branch
        %260 = sbr.rel (%p258) target = $region20
      $region19: #{wide_res_block_pallas.1} parent=11 // pred_region
        _
      $region20: #{wide_res_block_pallas.1} parent=11 // pred_fallthru
        _
      // Predicated region
      $region21: #{wide_res_block_pallas.1} parent=11 // pred_check
        %p261 = pneg %p130
      $region22: #{wide_res_block_pallas.1} parent=11 // pred_check_branch
        %263 = sbr.rel (%p261) target = $region24
      $region23: #{wide_res_block_pallas.1} parent=11 // pred_region
        _
      $region24: #{wide_res_block_pallas.1} parent=11 // pred_fallthru
        _
      // Predicated region
      $region25: #{wide_res_block_pallas.1} parent=11 // pred_check
        %p264 = pneg %p151
      $region26: #{wide_res_block_pallas.1} parent=11 // pred_check_branch
        %266 = sbr.rel (%p264) target = $region28
      $region27: #{wide_res_block_pallas.1} parent=11 // pred_region
        _
      $region28: #{wide_res_block_pallas.1} parent=11 // pred_fallthru
        _
      // Predicated region
      $region29: #{wide_res_block_pallas.1} parent=11 // pred_check
        %p267 = pneg %p172
      $region30: #{wide_res_block_pallas.1} parent=11 // pred_check_branch
        %269 = sbr.rel (%p267) target = $region32
      $region31: #{wide_res_block_pallas.1} parent=11 // pred_region
        _
      $region32: #{wide_res_block_pallas.1} parent=11 // pred_fallthru
        _
      // Predicated region
      $region33: #{wide_res_block_pallas.1} parent=11 // pred_check
        %p270 = pneg %p193
      $region34: #{wide_res_block_pallas.1} parent=11 // pred_check_branch
        %272 = sbr.rel (%p270) target = $region36
      $region35: #{wide_res_block_pallas.1} parent=11 // pred_region
        _
      $region36: #{wide_res_block_pallas.1} parent=11 // pred_fallthru
        _
      // Predicated region
      $region37: #{wide_res_block_pallas.1} parent=11 // pred_check
        %p273 = pneg %p214
      $region38: #{wide_res_block_pallas.1} parent=11 // pred_check_branch
        %275 = sbr.rel (%p273) target = $region40
      $region39: #{wide_res_block_pallas.1} parent=11 // pred_region
        _
      $region40: #{wide_res_block_pallas.1} parent=11 // pred_fallthru
        _
    $region12: #{wide_res_block_pallas.1} parent=5 // pred_fallthru
      _
    %p276 = scmp.lt.s32.totalorder %s15, 2
    // Predicated region
    $region41: #{wide_res_block_pallas.1} parent=5 // pred_check
      %p277 = pneg %p276
    $region42: #{wide_res_block_pallas.1} parent=5 // pred_check_branch
      %279 = sbr.rel (%p277) target = $region44
    $region43: #{wide_res_block_pallas.1} parent=5 // pred_region
      // Predicated region
      $region45: #{wide_res_block_pallas.1} parent=43 // pred_check
        %p280 = pneg %p35
      $region46: #{wide_res_block_pallas.1} parent=43 // pred_check_branch
        %282 = sbr.rel (%p280) target = $region48
      $region47: #{wide_res_block_pallas.1} parent=43 // pred_region
        %p283 = scmp.lt.s32.totalorder %s15, 1
        %s284 = scalar_select %p283, %s15, 1
        %s285 = smul.addr %s284, 16
        %s286 = smul.addr %s285, 8
        %s287 = scalar_lea.vmem %s0, %s286
      $region48: #{wide_res_block_pallas.1} parent=43 // pred_fallthru
        _
      // Predicated region
      $region49: #{wide_res_block_pallas.1} parent=43 // pred_check
        %p288 = pneg %p61
      $region50: #{wide_res_block_pallas.1} parent=43 // pred_check_branch
        %290 = sbr.rel (%p288) target = $region52
      $region51: #{wide_res_block_pallas.1} parent=43 // pred_region
        %p291 = scmp.lt.s32.totalorder %s15, 1
        %s292 = scalar_select %p291, %s15, 1
        %s293 = smul.addr %s292, 16
        %s294 = smul.addr %s293, 8
        %s295 = scalar_lea.vmem %s1, %s294
      $region52: #{wide_res_block_pallas.1} parent=43 // pred_fallthru
        _
    $region44: #{wide_res_block_pallas.1} parent=5 // pred_fallthru
      _
    %p296 = scmp.le.s32.totalorder 1, %s15
    %p297 = scmp.lt.s32.totalorder %s15, 3
    %p298 = pnand %p296, %p297
    %p299 = pneg %p298
    // Predicated region
    $region53: #{wide_res_block_pallas.1} parent=5 // pred_check
      _
    $region54: #{wide_res_block_pallas.1} parent=5 // pred_check_branch
      %301 = sbr.rel (%p298) target = $region56
    $region55: #{wide_res_block_pallas.1} parent=5 // pred_region
      %s302 = ssub.s32 %s15, 1
      %p303 = scmp.lt.s32.totalorder %s20, 1
      %s304 = scalar_select %p303, %s20, 1
      %s305 = smul.addr %s304, 16
      %s306 = smul.addr %s305, 8
      %s307 = scalar_lea.vmem %s0, %s306
      %p308 = pneg %p41
      %p309 = pneg %p38
      %p310 = scmp.lt.s32.totalorder %s20, 1
      %s311 = scalar_select %p310, %s20, 1
      %s312 = smul.addr %s311, 16
      %s313 = smul.addr %s312, 8
      %s314 = scalar_lea.vmem %s1, %s313
      %p315 = pneg %p67
      %p316 = pneg %p64
      %p317 = pneg %p88
      %p318 = pneg %p85
      %p319 = pneg %p109
      %p320 = pneg %p106
      %p321 = pneg %p130
      %p322 = pneg %p127
      %p323 = pneg %p151
      %p324 = pneg %p148
      %p325 = pneg %p172
      %p326 = pneg %p169
      %p327 = pneg %p193
      %p328 = pneg %p190
      %p329 = pneg %p214
      %p330 = pneg %p211
      %p331 = pneg %p240
      %p332 = pneg %p237
      %p333 = scmp.lt.s32.totalorder %s20, 1
      %s334 = scalar_select %p333, %s20, 1
      %s335 = smul.addr %s334, 8
      %s336 = smul.addr %s335, 8
      %s337 = scalar_lea.vmem %s9, %s336
      %p338 = scmp.lt.s32.totalorder %s20, 1
      %s339 = scalar_select %p338, %s20, 1
      %s340 = smul.addr %s339, 16
      %s341 = smul.addr %s340, 8
      %s342 = scalar_lea.vmem %s0, %s341
      %p343 = scmp.lt.s32.totalorder %s20, 1
      %s344 = scalar_select %p343, %s20, 1
      %s345 = smul.addr %s344, 16
      %s346 = smul.addr %s345, 8
      %s347 = scalar_lea.vmem %s1, %s346
      %p348 = scmp.lt.s32.totalorder %s20, 1
      %s349 = scalar_select %p348, %s20, 1
      %s350 = smul.addr %s349, 8
      %s351 = smul.addr %s350, 8
      %s352 = scalar_lea.vmem %s9, %s351
      %v354 = vld [vmem:[%s2] sm:$0x1]
      %v355 = vld [vmem:[%s3] sm:$0x1]
      %vm356 = vcmask 60416
      %357 = vst.msk [vmem:[#allocation2] sm:$0xf] %vm356, 0
      %vm358 = vcmask 57344
      %vm359 = vsmask.f32 256
      %vm360 = vmand %vm358, %vm359
      %v361 = vld [vmem:[#allocation2 + $0x4] sm:$0x1]
      %v362 = vsel %vm360, 0, %v361
      %363 = vst [vmem:[#allocation2 + $0x4] sm:$0x1] %v362
      %364 = vst.msk [vmem:[#allocation2 + $0x8] sm:$0xf] %vm356, 0
      %v365 = vld [vmem:[#allocation2 + $0xc] sm:$0x1]
      %v366 = vsel %vm360, 0, %v365
      %367 = vst [vmem:[#allocation2 + $0xc] sm:$0x1] %v366
      %368 = vst.msk [vmem:[#allocation2 + $0x10] sm:$0xf] %vm356, 0
      %v369 = vld [vmem:[#allocation2 + $0x14] sm:$0x1]
      %v370 = vsel %vm360, 0, %v369
      %371 = vst [vmem:[#allocation2 + $0x14] sm:$0x1] %v370
      %372 = vst.msk [vmem:[#allocation2 + $0x18] sm:$0xf] %vm356, 0
      %v373 = vld [vmem:[#allocation2 + $0x1c] sm:$0x1]
      %v374 = vsel %vm360, 0, %v373
      %375 = vst [vmem:[#allocation2 + $0x1c] sm:$0x1] %v374
      %376 = vst.msk [vmem:[#allocation2 + $0x20] sm:$0xf] %vm356, 0
      %v377 = vld [vmem:[#allocation2 + $0x24] sm:$0x1]
      %v378 = vsel %vm360, 0, %v377
      %379 = vst [vmem:[#allocation2 + $0x24] sm:$0x1] %v378
      %380 = vst.msk [vmem:[#allocation2 + $0x28] sm:$0xf] %vm356, 0
      %v381 = vld [vmem:[#allocation2 + $0x2c] sm:$0x1]
      %v382 = vsel %vm360, 0, %v381
      %383 = vst [vmem:[#allocation2 + $0x2c] sm:$0x1] %v382
      %384 = vst.msk [vmem:[#allocation2 + $0x30] sm:$0xf] %vm356, 0
      %v385 = vld [vmem:[#allocation2 + $0x34] sm:$0x1]
      %v386 = vsel %vm360, 0, %v385
      %387 = vst [vmem:[#allocation2 + $0x34] sm:$0x1] %v386
      %388 = vst.msk [vmem:[#allocation2 + $0x38] sm:$0xf] %vm356, 0
      %v389 = vld [vmem:[#allocation2 + $0x3c] sm:$0x1]
      %v390 = vsel %vm360, 0, %v389
      %391 = vst [vmem:[#allocation2 + $0x3c] sm:$0x1] %v390
      %392 = vst.msk [vmem:[#allocation2 + $0x40] sm:$0xf] %vm356, 0
      %v393 = vld [vmem:[#allocation2 + $0x44] sm:$0x1]
      %v394 = vsel %vm360, 0, %v393
      %395 = vst [vmem:[#allocation2 + $0x44] sm:$0x1] %v394
      %396 = vst.msk [vmem:[#allocation2 + $0x48] sm:$0xf] %vm356, 0
      %v397 = vld [vmem:[#allocation2 + $0x4c] sm:$0x1]
      %v398 = vsel %vm360, 0, %v397
      %399 = vst [vmem:[#allocation2 + $0x4c] sm:$0x1] %v398
      %400 = vst.msk [vmem:[#allocation2 + $0x50] sm:$0xf] %vm356, 0
      %v401 = vld [vmem:[#allocation2 + $0x54] sm:$0x1]
      %v402 = vsel %vm360, 0, %v401
      %403 = vst [vmem:[#allocation2 + $0x54] sm:$0x1] %v402
      %404 = vst.msk [vmem:[#allocation2 + $0x58] sm:$0xf] %vm356, 0
      %v405 = vld [vmem:[#allocation2 + $0x5c] sm:$0x1]
      %v406 = vsel %vm360, 0, %v405
      %407 = vst [vmem:[#allocation2 + $0x5c] sm:$0x1] %v406
      %408 = vst.msk [vmem:[#allocation2 + $0x60] sm:$0xf] %vm356, 0
      %v409 = vld [vmem:[#allocation2 + $0x64] sm:$0x1]
      %v410 = vsel %vm360, 0, %v409
      %411 = vst [vmem:[#allocation2 + $0x64] sm:$0x1] %v410
      %412 = vst.msk [vmem:[#allocation2 + $0x68] sm:$0xf] %vm356, 0
      %v413 = vld [vmem:[#allocation2 + $0x6c] sm:$0x1]
      %v414 = vsel %vm360, 0, %v413
      %415 = vst [vmem:[#allocation2 + $0x6c] sm:$0x1] %v414
      %416 = vst.msk [vmem:[#allocation2 + $0x70] sm:$0xf] %vm356, 0
      %v417 = vld [vmem:[#allocation2 + $0x74] sm:$0x1]
      %v418 = vsel %vm360, 0, %v417
      %419 = vst [vmem:[#allocation2 + $0x74] sm:$0x1] %v418
      %420 = vst.msk [vmem:[#allocation2 + $0x78] sm:$0xf] %vm356, 0
      %v421 = vld [vmem:[#allocation2 + $0x7c] sm:$0x1]
      %v422 = vsel %vm360, 0, %v421
      %423 = vst [vmem:[#allocation2 + $0x7c] sm:$0x1] %v422
      %424 = vst.msk [vmem:[#allocation2 + $0x80] sm:$0xf] %vm356, 0
      %v425 = vld [vmem:[#allocation2 + $0x84] sm:$0x1]
      %v426 = vsel %vm360, 0, %v425
      %427 = vst [vmem:[#allocation2 + $0x84] sm:$0x1] %v426
      %428 = vst.msk [vmem:[#allocation2 + $0x88] sm:$0xf] %vm356, 0
      %v429 = vld [vmem:[#allocation2 + $0x8c] sm:$0x1]
      %v430 = vsel %vm360, 0, %v429
      %431 = vst [vmem:[#allocation2 + $0x8c] sm:$0x1] %v430
      %v432 = vld [vmem:[%s342] sm:$0xff]
      %v433 = vld [vmem:[%s342 + $0x8] sm:$0xff]
      %v434 = vld [vmem:[%s342 + $0x10] sm:$0xff]
      %v435 = vld [vmem:[%s342 + $0x18] sm:$0xff]
      %v436 = vld [vmem:[%s342 + $0x20] sm:$0xff]
      %v437 = vld [vmem:[%s342 + $0x28] sm:$0xff]
      %v438 = vld [vmem:[%s342 + $0x30] sm:$0xff]
      %v439 = vld [vmem:[%s342 + $0x38] sm:$0xff]
      %v440 = vld [vmem:[%s342 + $0x40] sm:$0xff]
      %v441 = vld [vmem:[%s342 + $0x48] sm:$0xff]
      %v442 = vld [vmem:[%s342 + $0x50] sm:$0xff]
      %v443 = vld [vmem:[%s342 + $0x58] sm:$0xff]
      %v444 = vld [vmem:[%s342 + $0x60] sm:$0xff]
      %v445 = vld [vmem:[%s342 + $0x68] sm:$0xff]
      %v446 = vld [vmem:[%s342 + $0x70] sm:$0xff]
      %v447 = vld [vmem:[%s342 + $0x78] sm:$0xff]
      %v449 = vlaneseq
      %v450 = vshrl.u32 %v449, 7
      %v451 = vsub.s32 0, %v450
      %v452 = vrot.slane %v354, %v451
      %v454 = vmul.f32 %v432, %v452
      %v455 = vmul.f32 %v433, %v452
      %v456 = vmul.f32 %v434, %v452
      %v457 = vmul.f32 %v435, %v452
      %v458 = vmul.f32 %v436, %v452
      %v459 = vmul.f32 %v437, %v452
      %v460 = vmul.f32 %v438, %v452
      %v461 = vmul.f32 %v439, %v452
      %v462 = vmul.f32 %v440, %v452
      %v463 = vmul.f32 %v441, %v452
      %v464 = vmul.f32 %v442, %v452
      %v465 = vmul.f32 %v443, %v452
      %v466 = vmul.f32 %v444, %v452
      %v467 = vmul.f32 %v445, %v452
      %v468 = vmul.f32 %v446, %v452
      %v469 = vmul.f32 %v447, %v452
      %v471 = vlaneseq
      %v472 = vshrl.u32 %v471, 7
      %v473 = vsub.s32 0, %v472
      %v474 = vrot.slane %v355, %v473
      %v476 = vadd.f32 %v454, %v474
      %v477 = vadd.f32 %v455, %v474
      %v478 = vadd.f32 %v456, %v474
      %v479 = vadd.f32 %v457, %v474
      %v480 = vadd.f32 %v458, %v474
      %v481 = vadd.f32 %v459, %v474
      %v482 = vadd.f32 %v460, %v474
      %v483 = vadd.f32 %v461, %v474
      %v484 = vadd.f32 %v462, %v474
      %v485 = vadd.f32 %v463, %v474
      %v486 = vadd.f32 %v464, %v474
      %v487 = vadd.f32 %v465, %v474
      %v488 = vadd.f32 %v466, %v474
      %v489 = vadd.f32 %v467, %v474
      %v490 = vadd.f32 %v468, %v474
      %v491 = vadd.f32 %v469, %v474
      %v492 = vmax.f32 %v476, 0.0
      %v493 = vmax.f32 %v477, 0.0
      %v494 = vmax.f32 %v478, 0.0
      %v495 = vmax.f32 %v479, 0.0
      %v496 = vmax.f32 %v480, 0.0
      %v497 = vmax.f32 %v481, 0.0
      %v498 = vmax.f32 %v482, 0.0
      %v499 = vmax.f32 %v483, 0.0
      %v500 = vmax.f32 %v484, 0.0
      %v501 = vmax.f32 %v485, 0.0
      %v502 = vmax.f32 %v486, 0.0
      %v503 = vmax.f32 %v487, 0.0
      %v504 = vmax.f32 %v488, 0.0
      %v505 = vmax.f32 %v489, 0.0
      %v506 = vmax.f32 %v490, 0.0
      %v507 = vmax.f32 %v491, 0.0
      %v508 = vpack.c.bf16 %v492, %v492
      %v509 = vpack.c.bf16 %v493, %v493
      %v510 = vpack.c.bf16 %v494, %v494
      %v511 = vpack.c.bf16 %v495, %v495
      %v512 = vpack.c.bf16 %v496, %v496
      %v513 = vpack.c.bf16 %v497, %v497
      %v514 = vpack.c.bf16 %v498, %v498
      %v515 = vpack.c.bf16 %v499, %v499
      %v516 = vpack.c.bf16 %v500, %v500
      %v517 = vpack.c.bf16 %v501, %v501
      %v518 = vpack.c.bf16 %v502, %v502
      %v519 = vpack.c.bf16 %v503, %v503
      %v520 = vpack.c.bf16 %v504, %v504
      %v521 = vpack.c.bf16 %v505, %v505
      %v522 = vpack.c.bf16 %v506, %v506
      %v523 = vpack.c.bf16 %v507, %v507
      %v540 = vunpack.c.l.b16 %v508
      %v541 = vunpack.c.l.b16 %v509
      %v542 = vunpack.c.l.b16 %v510
      %v543 = vunpack.c.l.b16 %v511
      %v544 = vunpack.c.l.b16 %v512
      %v545 = vunpack.c.l.b16 %v513
      %v546 = vunpack.c.l.b16 %v514
      %v547 = vunpack.c.l.b16 %v515
      %v548 = vunpack.c.l.b16 %v516
      %v549 = vunpack.c.l.b16 %v517
      %v550 = vunpack.c.l.b16 %v518
      %v551 = vunpack.c.l.b16 %v519
      %v552 = vunpack.c.l.b16 %v520
      %v553 = vunpack.c.l.b16 %v521
      %v554 = vunpack.c.l.b16 %v522
      %v555 = vunpack.c.l.b16 %v523
      %v556 = vpack.c.b16 %v540, %v540
      %v557 = vpack.c.b16 %v541, %v541
      %v558 = vpack.c.b16 %v542, %v542
      %v559 = vpack.c.b16 %v543, %v543
      %v560 = vpack.c.b16 %v544, %v544
      %v561 = vpack.c.b16 %v545, %v545
      %v562 = vpack.c.b16 %v546, %v546
      %v563 = vpack.c.b16 %v547, %v547
      %v564 = vpack.c.b16 %v548, %v548
      %v565 = vpack.c.b16 %v549, %v549
      %v566 = vpack.c.b16 %v550, %v550
      %v567 = vpack.c.b16 %v551, %v551
      %v568 = vpack.c.b16 %v552, %v552
      %v569 = vpack.c.b16 %v553, %v553
      %v570 = vpack.c.b16 %v554, %v554
      %v571 = vpack.c.b16 %v555, %v555
      %572 = vrot.lane.b32.xlu0 %v556, 4
      %v573 = vpop.permute.xlu0 %572
      %574 = vrot.lane.b32.xlu0 %v557, 4
      %v575 = vpop.permute.xlu0 %574
      %576 = vrot.lane.b32.xlu0 %v558, 4
      %v577 = vpop.permute.xlu0 %576
      %578 = vrot.lane.b32.xlu0 %v559, 4
      %v579 = vpop.permute.xlu0 %578
      %580 = vrot.lane.b32.xlu0 %v560, 4
      %v581 = vpop.permute.xlu0 %580
      %582 = vrot.lane.b32.xlu0 %v561, 4
      %v583 = vpop.permute.xlu0 %582
      %584 = vrot.lane.b32.xlu0 %v562, 4
      %v585 = vpop.permute.xlu0 %584
      %586 = vrot.lane.b32.xlu0 %v563, 4
      %v587 = vpop.permute.xlu0 %586
      %588 = vrot.lane.b32.xlu0 %v564, 4
      %v589 = vpop.permute.xlu0 %588
      %590 = vrot.lane.b32.xlu0 %v565, 4
      %v591 = vpop.permute.xlu0 %590
      %592 = vrot.lane.b32.xlu0 %v566, 4
      %v593 = vpop.permute.xlu0 %592
      %594 = vrot.lane.b32.xlu0 %v567, 4
      %v595 = vpop.permute.xlu0 %594
      %596 = vrot.lane.b32.xlu0 %v568, 4
      %v597 = vpop.permute.xlu0 %596
      %598 = vrot.lane.b32.xlu0 %v569, 4
      %v599 = vpop.permute.xlu0 %598
      %600 = vrot.lane.b32.xlu0 %v570, 4
      %v601 = vpop.permute.xlu0 %600
      %602 = vrot.lane.b32.xlu0 %v571, 4
      %v603 = vpop.permute.xlu0 %602
      %s620 = scalar_lea.vmem [#allocation2], 8
      %vm621 = vcmask 60448
      %622 = vst.msk [vmem:[%s620] sm:$0xf] %vm621, %v573
      %623 = vst.msk [vmem:[%s620 + $0x8] sm:$0xf] %vm621, %v575
      %624 = vst.msk [vmem:[%s620 + $0x10] sm:$0xf] %vm621, %v577
      %625 = vst.msk [vmem:[%s620 + $0x18] sm:$0xf] %vm621, %v579
      %626 = vst.msk [vmem:[%s620 + $0x20] sm:$0xf] %vm621, %v581
      %627 = vst.msk [vmem:[%s620 + $0x28] sm:$0xf] %vm621, %v583
      %628 = vst.msk [vmem:[%s620 + $0x30] sm:$0xf] %vm621, %v585
      %629 = vst.msk [vmem:[%s620 + $0x38] sm:$0xf] %vm621, %v587
      %630 = vst.msk [vmem:[%s620 + $0x40] sm:$0xf] %vm621, %v589
      %631 = vst.msk [vmem:[%s620 + $0x48] sm:$0xf] %vm621, %v591
      %632 = vst.msk [vmem:[%s620 + $0x50] sm:$0xf] %vm621, %v593
      %633 = vst.msk [vmem:[%s620 + $0x58] sm:$0xf] %vm621, %v595
      %634 = vst.msk [vmem:[%s620 + $0x60] sm:$0xf] %vm621, %v597
      %635 = vst.msk [vmem:[%s620 + $0x68] sm:$0xf] %vm621, %v599
      %636 = vst.msk [vmem:[%s620 + $0x70] sm:$0xf] %vm621, %v601
      %637 = vst.msk [vmem:[%s620 + $0x78] sm:$0xf] %vm621, %v603
      %v638 = vld [vmem:[%s347] sm:$0xff]
      %v639 = vld [vmem:[%s347 + $0x8] sm:$0xff]
      %v640 = vld [vmem:[%s347 + $0x10] sm:$0xff]
      %v641 = vld [vmem:[%s347 + $0x18] sm:$0xff]
      %v642 = vld [vmem:[%s347 + $0x20] sm:$0xff]
      %v643 = vld [vmem:[%s347 + $0x28] sm:$0xff]
      %v644 = vld [vmem:[%s347 + $0x30] sm:$0xff]
      %v645 = vld [vmem:[%s347 + $0x38] sm:$0xff]
      %v646 = vld [vmem:[%s347 + $0x40] sm:$0xff]
      %v647 = vld [vmem:[%s347 + $0x48] sm:$0xff]
      %v648 = vld [vmem:[%s347 + $0x50] sm:$0xff]
      %v649 = vld [vmem:[%s347 + $0x58] sm:$0xff]
      %v650 = vld [vmem:[%s347 + $0x60] sm:$0xff]
      %v651 = vld [vmem:[%s347 + $0x68] sm:$0xff]
      %v652 = vld [vmem:[%s347 + $0x70] sm:$0xff]
      %v653 = vld [vmem:[%s347 + $0x78] sm:$0xff]
      %v654 = vmul.f32 %v638, %v452
      %v655 = vmul.f32 %v639, %v452
      %v656 = vmul.f32 %v640, %v452
      %v657 = vmul.f32 %v641, %v452
      %v658 = vmul.f32 %v642, %v452
      %v659 = vmul.f32 %v643, %v452
      %v660 = vmul.f32 %v644, %v452
      %v661 = vmul.f32 %v645, %v452
      %v662 = vmul.f32 %v646, %v452
      %v663 = vmul.f32 %v647, %v452
      %v664 = vmul.f32 %v648, %v452
      %v665 = vmul.f32 %v649, %v452
      %v666 = vmul.f32 %v650, %v452
      %v667 = vmul.f32 %v651, %v452
      %v668 = vmul.f32 %v652, %v452
      %v669 = vmul.f32 %v653, %v452
      %v670 = vadd.f32 %v654, %v474
      %v671 = vadd.f32 %v655, %v474
      %v672 = vadd.f32 %v656, %v474
      %v673 = vadd.f32 %v657, %v474
      %v674 = vadd.f32 %v658, %v474
      %v675 = vadd.f32 %v659, %v474
      %v676 = vadd.f32 %v660, %v474
      %v677 = vadd.f32 %v661, %v474
      %v678 = vadd.f32 %v662, %v474
      %v679 = vadd.f32 %v663, %v474
      %v680 = vadd.f32 %v664, %v474
      %v681 = vadd.f32 %v665, %v474
      %v682 = vadd.f32 %v666, %v474
      %v683 = vadd.f32 %v667, %v474
      %v684 = vadd.f32 %v668, %v474
      %v685 = vadd.f32 %v669, %v474
      %v686 = vmax.f32 %v670, 0.0
      %v687 = vmax.f32 %v671, 0.0
      %v688 = vmax.f32 %v672, 0.0
      %v689 = vmax.f32 %v673, 0.0
      %v690 = vmax.f32 %v674, 0.0
      %v691 = vmax.f32 %v675, 0.0
      %v692 = vmax.f32 %v676, 0.0
      %v693 = vmax.f32 %v677, 0.0
      %v694 = vmax.f32 %v678, 0.0
      %v695 = vmax.f32 %v679, 0.0
      %v696 = vmax.f32 %v680, 0.0
      %v697 = vmax.f32 %v681, 0.0
      %v698 = vmax.f32 %v682, 0.0
      %v699 = vmax.f32 %v683, 0.0
      %v700 = vmax.f32 %v684, 0.0
      %v701 = vmax.f32 %v685, 0.0
      %v702 = vpack.c.bf16 %v686, %v686
      %v703 = vpack.c.bf16 %v687, %v687
      %v704 = vpack.c.bf16 %v688, %v688
      %v705 = vpack.c.bf16 %v689, %v689
      %v706 = vpack.c.bf16 %v690, %v690
      %v707 = vpack.c.bf16 %v691, %v691
      %v708 = vpack.c.bf16 %v692, %v692
      %v709 = vpack.c.bf16 %v693, %v693
      %v710 = vpack.c.bf16 %v694, %v694
      %v711 = vpack.c.bf16 %v695, %v695
      %v712 = vpack.c.bf16 %v696, %v696
      %v713 = vpack.c.bf16 %v697, %v697
      %v714 = vpack.c.bf16 %v698, %v698
      %v715 = vpack.c.bf16 %v699, %v699
      %v716 = vpack.c.bf16 %v700, %v700
      %v717 = vpack.c.bf16 %v701, %v701
      %v734 = vunpack.c.l.b16 %v702
      %v735 = vunpack.c.l.b16 %v703
      %v736 = vunpack.c.l.b16 %v704
      %v737 = vunpack.c.l.b16 %v705
      %v738 = vunpack.c.l.b16 %v706
      %v739 = vunpack.c.l.b16 %v707
      %v740 = vunpack.c.l.b16 %v708
      %v741 = vunpack.c.l.b16 %v709
      %v742 = vunpack.c.l.b16 %v710
      %v743 = vunpack.c.l.b16 %v711
      %v744 = vunpack.c.l.b16 %v712
      %v745 = vunpack.c.l.b16 %v713
      %v746 = vunpack.c.l.b16 %v714
      %v747 = vunpack.c.l.b16 %v715
      %v748 = vunpack.c.l.b16 %v716
      %v749 = vunpack.c.l.b16 %v717
      %v750 = vpack.c.b16 %v734, %v734
      %v751 = vpack.c.b16 %v735, %v735
      %v752 = vpack.c.b16 %v736, %v736
      %v753 = vpack.c.b16 %v737, %v737
      %v754 = vpack.c.b16 %v738, %v738
      %v755 = vpack.c.b16 %v739, %v739
      %v756 = vpack.c.b16 %v740, %v740
      %v757 = vpack.c.b16 %v741, %v741
      %v758 = vpack.c.b16 %v742, %v742
      %v759 = vpack.c.b16 %v743, %v743
      %v760 = vpack.c.b16 %v744, %v744
      %v761 = vpack.c.b16 %v745, %v745
      %v762 = vpack.c.b16 %v746, %v746
      %v763 = vpack.c.b16 %v747, %v747
      %v764 = vpack.c.b16 %v748, %v748
      %v765 = vpack.c.b16 %v749, %v749
      %v767 = vshrl.u32 %v750, 16
      %v769 = vrot.slane %v767, 7
      %v770 = vshll.u32 %v750, 16
      %v772 = vor.u32 %v769, %v770
      %v773 = vrot.slane %v769, 4
      %v775 = vshrl.u32 %v751, 16
      %v777 = vrot.slane %v775, 7
      %v778 = vshll.u32 %v751, 16
      %v780 = vor.u32 %v777, %v778
      %v781 = vrot.slane %v777, 4
      %v783 = vshrl.u32 %v752, 16
      %v785 = vrot.slane %v783, 7
      %v786 = vshll.u32 %v752, 16
      %v788 = vor.u32 %v785, %v786
      %v789 = vrot.slane %v785, 4
      %v791 = vshrl.u32 %v753, 16
      %v793 = vrot.slane %v791, 7
      %v794 = vshll.u32 %v753, 16
      %v796 = vor.u32 %v793, %v794
      %v797 = vrot.slane %v793, 4
      %v799 = vshrl.u32 %v754, 16
      %v801 = vrot.slane %v799, 7
      %v802 = vshll.u32 %v754, 16
      %v804 = vor.u32 %v801, %v802
      %v805 = vrot.slane %v801, 4
      %v807 = vshrl.u32 %v755, 16
      %v809 = vrot.slane %v807, 7
      %v810 = vshll.u32 %v755, 16
      %v812 = vor.u32 %v809, %v810
      %v813 = vrot.slane %v809, 4
      %v815 = vshrl.u32 %v756, 16
      %v817 = vrot.slane %v815, 7
      %v818 = vshll.u32 %v756, 16
      %v820 = vor.u32 %v817, %v818
      %v821 = vrot.slane %v817, 4
      %v823 = vshrl.u32 %v757, 16
      %v825 = vrot.slane %v823, 7
      %v826 = vshll.u32 %v757, 16
      %v828 = vor.u32 %v825, %v826
      %v829 = vrot.slane %v825, 4
      %v831 = vshrl.u32 %v758, 16
      %v833 = vrot.slane %v831, 7
      %v834 = vshll.u32 %v758, 16
      %v836 = vor.u32 %v833, %v834
      %v837 = vrot.slane %v833, 4
      %v839 = vshrl.u32 %v759, 16
      %v841 = vrot.slane %v839, 7
      %v842 = vshll.u32 %v759, 16
      %v844 = vor.u32 %v841, %v842
      %v845 = vrot.slane %v841, 4
      %v847 = vshrl.u32 %v760, 16
      %v849 = vrot.slane %v847, 7
      %v850 = vshll.u32 %v760, 16
      %v852 = vor.u32 %v849, %v850
      %v853 = vrot.slane %v849, 4
      %v855 = vshrl.u32 %v761, 16
      %v857 = vrot.slane %v855, 7
      %v858 = vshll.u32 %v761, 16
      %v860 = vor.u32 %v857, %v858
      %v861 = vrot.slane %v857, 4
      %v863 = vshrl.u32 %v762, 16
      %v865 = vrot.slane %v863, 7
      %v866 = vshll.u32 %v762, 16
      %v868 = vor.u32 %v865, %v866
      %v869 = vrot.slane %v865, 4
      %v871 = vshrl.u32 %v763, 16
      %v873 = vrot.slane %v871, 7
      %v874 = vshll.u32 %v763, 16
      %v876 = vor.u32 %v873, %v874
      %v877 = vrot.slane %v873, 4
      %v879 = vshrl.u32 %v764, 16
      %v881 = vrot.slane %v879, 7
      %v882 = vshll.u32 %v764, 16
      %v884 = vor.u32 %v881, %v882
      %v885 = vrot.slane %v881, 4
      %v887 = vshrl.u32 %v765, 16
      %v889 = vrot.slane %v887, 7
      %v890 = vshll.u32 %v765, 16
      %v892 = vor.u32 %v889, %v890
      %v893 = vrot.slane %v889, 4
      %vm926 = vcmask 27648
      %vm927 = vsmask.f32 7938
      %vm928 = vmand %vm926, %vm927
      %v929 = vld [vmem:[%s620] sm:$0xf]
      %v930 = vsel %vm928, %v772, %v929
      %931 = vst [vmem:[%s620] sm:$0xf] %v930
      %vm932 = vcmask 24576
      %vm933 = vmand %vm932, %vm359
      %v934 = vld [vmem:[%s620 + $0x4] sm:$0x1]
      %v935 = vsel %vm933, %v773, %v934
      %936 = vst [vmem:[%s620 + $0x4] sm:$0x1] %v935
      %v937 = vld [vmem:[%s620 + $0x8] sm:$0xf]
      %v938 = vsel %vm928, %v780, %v937
      %939 = vst [vmem:[%s620 + $0x8] sm:$0xf] %v938
      %v940 = vld [vmem:[%s620 + $0xc] sm:$0x1]
      %v941 = vsel %vm933, %v781, %v940
      %942 = vst [vmem:[%s620 + $0xc] sm:$0x1] %v941
      %v943 = vld [vmem:[%s620 + $0x10] sm:$0xf]
      %v944 = vsel %vm928, %v788, %v943
      %945 = vst [vmem:[%s620 + $0x10] sm:$0xf] %v944
      %v946 = vld [vmem:[%s620 + $0x14] sm:$0x1]
      %v947 = vsel %vm933, %v789, %v946
      %948 = vst [vmem:[%s620 + $0x14] sm:$0x1] %v947
      %v949 = vld [vmem:[%s620 + $0x18] sm:$0xf]
      %v950 = vsel %vm928, %v796, %v949
      %951 = vst [vmem:[%s620 + $0x18] sm:$0xf] %v950
      %v952 = vld [vmem:[%s620 + $0x1c] sm:$0x1]
      %v953 = vsel %vm933, %v797, %v952
      %954 = vst [vmem:[%s620 + $0x1c] sm:$0x1] %v953
      %v955 = vld [vmem:[%s620 + $0x20] sm:$0xf]
      %v956 = vsel %vm928, %v804, %v955
      %957 = vst [vmem:[%s620 + $0x20] sm:$0xf] %v956
      %v958 = vld [vmem:[%s620 + $0x24] sm:$0x1]
      %v959 = vsel %vm933, %v805, %v958
      %960 = vst [vmem:[%s620 + $0x24] sm:$0x1] %v959
      %v961 = vld [vmem:[%s620 + $0x28] sm:$0xf]
      %v962 = vsel %vm928, %v812, %v961
      %963 = vst [vmem:[%s620 + $0x28] sm:$0xf] %v962
      %v964 = vld [vmem:[%s620 + $0x2c] sm:$0x1]
      %v965 = vsel %vm933, %v813, %v964
      %966 = vst [vmem:[%s620 + $0x2c] sm:$0x1] %v965
      %v967 = vld [vmem:[%s620 + $0x30] sm:$0xf]
      %v968 = vsel %vm928, %v820, %v967
      %969 = vst [vmem:[%s620 + $0x30] sm:$0xf] %v968
      %v970 = vld [vmem:[%s620 + $0x34] sm:$0x1]
      %v971 = vsel %vm933, %v821, %v970
      %972 = vst [vmem:[%s620 + $0x34] sm:$0x1] %v971
      %v973 = vld [vmem:[%s620 + $0x38] sm:$0xf]
      %v974 = vsel %vm928, %v828, %v973
      %975 = vst [vmem:[%s620 + $0x38] sm:$0xf] %v974
      %v976 = vld [vmem:[%s620 + $0x3c] sm:$0x1]
      %v977 = vsel %vm933, %v829, %v976
      %978 = vst [vmem:[%s620 + $0x3c] sm:$0x1] %v977
      %v979 = vld [vmem:[%s620 + $0x40] sm:$0xf]
      %v980 = vsel %vm928, %v836, %v979
      %981 = vst [vmem:[%s620 + $0x40] sm:$0xf] %v980
      %v982 = vld [vmem:[%s620 + $0x44] sm:$0x1]
      %v983 = vsel %vm933, %v837, %v982
      %984 = vst [vmem:[%s620 + $0x44] sm:$0x1] %v983
      %v985 = vld [vmem:[%s620 + $0x48] sm:$0xf]
      %v986 = vsel %vm928, %v844, %v985
      %987 = vst [vmem:[%s620 + $0x48] sm:$0xf] %v986
      %v988 = vld [vmem:[%s620 + $0x4c] sm:$0x1]
      %v989 = vsel %vm933, %v845, %v988
      %990 = vst [vmem:[%s620 + $0x4c] sm:$0x1] %v989
      %v991 = vld [vmem:[%s620 + $0x50] sm:$0xf]
      %v992 = vsel %vm928, %v852, %v991
      %993 = vst [vmem:[%s620 + $0x50] sm:$0xf] %v992
      %v994 = vld [vmem:[%s620 + $0x54] sm:$0x1]
      %v995 = vsel %vm933, %v853, %v994
      %996 = vst [vmem:[%s620 + $0x54] sm:$0x1] %v995
      %v997 = vld [vmem:[%s620 + $0x58] sm:$0xf]
      %v998 = vsel %vm928, %v860, %v997
      %999 = vst [vmem:[%s620 + $0x58] sm:$0xf] %v998
      %v1000 = vld [vmem:[%s620 + $0x5c] sm:$0x1]
      %v1001 = vsel %vm933, %v861, %v1000
      %1002 = vst [vmem:[%s620 + $0x5c] sm:$0x1] %v1001
      %v1003 = vld [vmem:[%s620 + $0x60] sm:$0xf]
      %v1004 = vsel %vm928, %v868, %v1003
      %1005 = vst [vmem:[%s620 + $0x60] sm:$0xf] %v1004
      %v1006 = vld [vmem:[%s620 + $0x64] sm:$0x1]
      %v1007 = vsel %vm933, %v869, %v1006
      %1008 = vst [vmem:[%s620 + $0x64] sm:$0x1] %v1007
      %v1009 = vld [vmem:[%s620 + $0x68] sm:$0xf]
      %v1010 = vsel %vm928, %v876, %v1009
      %1011 = vst [vmem:[%s620 + $0x68] sm:$0xf] %v1010
      %v1012 = vld [vmem:[%s620 + $0x6c] sm:$0x1]
      %v1013 = vsel %vm933, %v877, %v1012
      %1014 = vst [vmem:[%s620 + $0x6c] sm:$0x1] %v1013
      %v1015 = vld [vmem:[%s620 + $0x70] sm:$0xf]
      %v1016 = vsel %vm928, %v884, %v1015
      %1017 = vst [vmem:[%s620 + $0x70] sm:$0xf] %v1016
      %v1018 = vld [vmem:[%s620 + $0x74] sm:$0x1]
      %v1019 = vsel %vm933, %v885, %v1018
      %1020 = vst [vmem:[%s620 + $0x74] sm:$0x1] %v1019
      %v1021 = vld [vmem:[%s620 + $0x78] sm:$0xf]
      %v1022 = vsel %vm928, %v892, %v1021
      %1023 = vst [vmem:[%s620 + $0x78] sm:$0xf] %v1022
      %v1024 = vld [vmem:[%s620 + $0x7c] sm:$0x1]
      %v1025 = vsel %vm933, %v893, %v1024
      %1026 = vst [vmem:[%s620 + $0x7c] sm:$0x1] %v1025
      %v1027 = vld [vmem:[#allocation2] sm:$0xf]
      %v1028 = vld [vmem:[#allocation2 + $0x4] sm:$0x1]
      %v1029 = vld [vmem:[#allocation2 + $0x8] sm:$0xf]
      %v1030 = vld [vmem:[#allocation2 + $0xc] sm:$0x1]
      %v1031 = vld [vmem:[#allocation2 + $0x10] sm:$0xf]
      %v1032 = vld [vmem:[#allocation2 + $0x14] sm:$0x1]
      %v1033 = vld [vmem:[#allocation2 + $0x18] sm:$0xf]
      %v1034 = vld [vmem:[#allocation2 + $0x1c] sm:$0x1]
      %v1035 = vld [vmem:[#allocation2 + $0x20] sm:$0xf]
      %v1036 = vld [vmem:[#allocation2 + $0x24] sm:$0x1]
      %v1037 = vld [vmem:[#allocation2 + $0x28] sm:$0xf]
      %v1038 = vld [vmem:[#allocation2 + $0x2c] sm:$0x1]
      %v1039 = vld [vmem:[#allocation2 + $0x30] sm:$0xf]
      %v1040 = vld [vmem:[#allocation2 + $0x34] sm:$0x1]
      %v1041 = vld [vmem:[#allocation2 + $0x38] sm:$0xf]
      %v1042 = vld [vmem:[#allocation2 + $0x3c] sm:$0x1]
      %v1043 = vld [vmem:[#allocation2 + $0x40] sm:$0xf]
      %v1044 = vld [vmem:[#allocation2 + $0x44] sm:$0x1]
      %v1045 = vld [vmem:[#allocation2 + $0x48] sm:$0xf]
      %v1046 = vld [vmem:[#allocation2 + $0x4c] sm:$0x1]
      %v1047 = vld [vmem:[#allocation2 + $0x50] sm:$0xf]
      %v1048 = vld [vmem:[#allocation2 + $0x54] sm:$0x1]
      %v1049 = vld [vmem:[#allocation2 + $0x58] sm:$0xf]
      %v1050 = vld [vmem:[#allocation2 + $0x5c] sm:$0x1]
      %v1051 = vld [vmem:[#allocation2 + $0x60] sm:$0xf]
      %v1052 = vld [vmem:[#allocation2 + $0x64] sm:$0x1]
      %v1053 = vld [vmem:[#allocation2 + $0x68] sm:$0xf]
      %v1054 = vld [vmem:[#allocation2 + $0x6c] sm:$0x1]
      %v1055 = vld [vmem:[#allocation2 + $0x70] sm:$0xf]
      %v1056 = vld [vmem:[#allocation2 + $0x74] sm:$0x1]
      %v1057 = vld [vmem:[#allocation2 + $0x78] sm:$0xf]
      %v1058 = vld [vmem:[#allocation2 + $0x7c] sm:$0x1]
      %v1059 = vld [vmem:[#allocation2 + $0x80] sm:$0xf]
      %v1060 = vld [vmem:[#allocation2 + $0x84] sm:$0x1]
      %vm1061 = vsmask.f32 3328
      %vm1062 = vsmask.f32 7440
      %vm1063 = vmor %vm1061, %vm1062
      %v1065 = vshrl.u32 %v1027, 16
      %v1067 = vrot.slane %v1065, 4
      %v1068 = vshll.u32 %v1027, 16
      %v1070 = vrot.slane %v1068, 5
      %v1071 = vor.u32 %v1067, %v1070
      %v1072 = vrot.slane %v1071, 4
      %v1074 = vshll.u32 %v1028, 16
      %v1076 = vrot.slane %v1074, 5
      %v1077 = vsel %vm1063, %v1072, %v1076
      %v1079 = vshrl.u32 %v1031, 16
      %v1081 = vrot.slane %v1079, 4
      %v1082 = vshll.u32 %v1031, 16
      %v1084 = vrot.slane %v1082, 5
      %v1085 = vor.u32 %v1081, %v1084
      %v1086 = vrot.slane %v1085, 4
      %v1088 = vshll.u32 %v1032, 16
      %v1090 = vrot.slane %v1088, 5
      %v1091 = vsel %vm1063, %v1086, %v1090
      %v1093 = vshrl.u32 %v1035, 16
      %v1095 = vrot.slane %v1093, 4
      %v1096 = vshll.u32 %v1035, 16
      %v1098 = vrot.slane %v1096, 5
      %v1099 = vor.u32 %v1095, %v1098
      %v1100 = vrot.slane %v1099, 4
      %v1102 = vshll.u32 %v1036, 16
      %v1104 = vrot.slane %v1102, 5
      %v1105 = vsel %vm1063, %v1100, %v1104
      %v1107 = vshrl.u32 %v1039, 16
      %v1109 = vrot.slane %v1107, 4
      %v1110 = vshll.u32 %v1039, 16
      %v1112 = vrot.slane %v1110, 5
      %v1113 = vor.u32 %v1109, %v1112
      %v1114 = vrot.slane %v1113, 4
      %v1116 = vshll.u32 %v1040, 16
      %v1118 = vrot.slane %v1116, 5
      %v1119 = vsel %vm1063, %v1114, %v1118
      %v1121 = vshrl.u32 %v1043, 16
      %v1123 = vrot.slane %v1121, 4
      %v1124 = vshll.u32 %v1043, 16
      %v1126 = vrot.slane %v1124, 5
      %v1127 = vor.u32 %v1123, %v1126
      %v1128 = vrot.slane %v1127, 4
      %v1130 = vshll.u32 %v1044, 16
      %v1132 = vrot.slane %v1130, 5
      %v1133 = vsel %vm1063, %v1128, %v1132
      %v1135 = vshrl.u32 %v1047, 16
      %v1137 = vrot.slane %v1135, 4
      %v1138 = vshll.u32 %v1047, 16
      %v1140 = vrot.slane %v1138, 5
      %v1141 = vor.u32 %v1137, %v1140
      %v1142 = vrot.slane %v1141, 4
      %v1144 = vshll.u32 %v1048, 16
      %v1146 = vrot.slane %v1144, 5
      %v1147 = vsel %vm1063, %v1142, %v1146
      %v1149 = vshrl.u32 %v1051, 16
      %v1151 = vrot.slane %v1149, 4
      %v1152 = vshll.u32 %v1051, 16
      %v1154 = vrot.slane %v1152, 5
      %v1155 = vor.u32 %v1151, %v1154
      %v1156 = vrot.slane %v1155, 4
      %v1158 = vshll.u32 %v1052, 16
      %v1160 = vrot.slane %v1158, 5
      %v1161 = vsel %vm1063, %v1156, %v1160
      %v1163 = vshrl.u32 %v1055, 16
      %v1165 = vrot.slane %v1163, 4
      %v1166 = vshll.u32 %v1055, 16
      %v1168 = vrot.slane %v1166, 5
      %v1169 = vor.u32 %v1165, %v1168
      %v1170 = vrot.slane %v1169, 4
      %v1172 = vshll.u32 %v1056, 16
      %v1174 = vrot.slane %v1172, 5
      %v1175 = vsel %vm1063, %v1170, %v1174
      %v1177 = vshrl.u32 %v1029, 16
      %v1179 = vrot.slane %v1177, 4
      %v1180 = vshll.u32 %v1029, 16
      %v1182 = vrot.slane %v1180, 5
      %v1183 = vor.u32 %v1179, %v1182
      %v1184 = vrot.slane %v1183, 4
      %v1186 = vshll.u32 %v1030, 16
      %v1188 = vrot.slane %v1186, 5
      %v1189 = vsel %vm1063, %v1184, %v1188
      %v1191 = vshrl.u32 %v1033, 16
      %v1193 = vrot.slane %v1191, 4
      %v1194 = vshll.u32 %v1033, 16
      %v1196 = vrot.slane %v1194, 5
      %v1197 = vor.u32 %v1193, %v1196
      %v1198 = vrot.slane %v1197, 4
      %v1200 = vshll.u32 %v1034, 16
      %v1202 = vrot.slane %v1200, 5
      %v1203 = vsel %vm1063, %v1198, %v1202
      %v1205 = vshrl.u32 %v1037, 16
      %v1207 = vrot.slane %v1205, 4
      %v1208 = vshll.u32 %v1037, 16
      %v1210 = vrot.slane %v1208, 5
      %v1211 = vor.u32 %v1207, %v1210
      %v1212 = vrot.slane %v1211, 4
      %v1214 = vshll.u32 %v1038, 16
      %v1216 = vrot.slane %v1214, 5
      %v1217 = vsel %vm1063, %v1212, %v1216
      %v1219 = vshrl.u32 %v1041, 16
      %v1221 = vrot.slane %v1219, 4
      %v1222 = vshll.u32 %v1041, 16
      %v1224 = vrot.slane %v1222, 5
      %v1225 = vor.u32 %v1221, %v1224
      %v1226 = vrot.slane %v1225, 4
      %v1228 = vshll.u32 %v1042, 16
      %v1230 = vrot.slane %v1228, 5
      %v1231 = vsel %vm1063, %v1226, %v1230
      %v1233 = vshrl.u32 %v1045, 16
      %v1235 = vrot.slane %v1233, 4
      %v1236 = vshll.u32 %v1045, 16
      %v1238 = vrot.slane %v1236, 5
      %v1239 = vor.u32 %v1235, %v1238
      %v1240 = vrot.slane %v1239, 4
      %v1242 = vshll.u32 %v1046, 16
      %v1244 = vrot.slane %v1242, 5
      %v1245 = vsel %vm1063, %v1240, %v1244
      %v1247 = vshrl.u32 %v1049, 16
      %v1249 = vrot.slane %v1247, 4
      %v1250 = vshll.u32 %v1049, 16
      %v1252 = vrot.slane %v1250, 5
      %v1253 = vor.u32 %v1249, %v1252
      %v1254 = vrot.slane %v1253, 4
      %v1256 = vshll.u32 %v1050, 16
      %v1258 = vrot.slane %v1256, 5
      %v1259 = vsel %vm1063, %v1254, %v1258
      %v1261 = vshrl.u32 %v1053, 16
      %v1263 = vrot.slane %v1261, 4
      %v1264 = vshll.u32 %v1053, 16
      %v1266 = vrot.slane %v1264, 5
      %v1267 = vor.u32 %v1263, %v1266
      %v1268 = vrot.slane %v1267, 4
      %v1270 = vshll.u32 %v1054, 16
      %v1272 = vrot.slane %v1270, 5
      %v1273 = vsel %vm1063, %v1268, %v1272
      %v1275 = vshrl.u32 %v1057, 16
      %v1277 = vrot.slane %v1275, 4
      %v1278 = vshll.u32 %v1057, 16
      %v1280 = vrot.slane %v1278, 5
      %v1281 = vor.u32 %v1277, %v1280
      %v1282 = vrot.slane %v1281, 4
      %v1284 = vshll.u32 %v1058, 16
      %v1286 = vrot.slane %v1284, 5
      %v1287 = vsel %vm1063, %v1282, %v1286
      %v1289 = vshrl.u32 %v1059, 16
      %v1291 = vrot.slane %v1289, 4
      %v1292 = vshll.u32 %v1059, 16
      %v1294 = vrot.slane %v1292, 5
      %v1295 = vor.u32 %v1291, %v1294
      %v1296 = vrot.slane %v1295, 4
      %v1298 = vshll.u32 %v1060, 16
      %v1300 = vrot.slane %v1298, 5
      %v1301 = vsel %vm1063, %v1296, %v1300
      %v1310 = vunpack.c.l.b16 %v1027
      %v1311 = vunpack.c.l.b16 %v1031
      %v1312 = vunpack.c.l.b16 %v1035
      %v1313 = vunpack.c.l.b16 %v1039
      %v1314 = vunpack.c.l.b16 %v1043
      %v1315 = vunpack.c.l.b16 %v1047
      %v1316 = vunpack.c.l.b16 %v1051
      %v1317 = vunpack.c.l.b16 %v1055
      %v1318 = vpack.c.b16 %v1311, %v1310
      %v1319 = vpack.c.b16 %v1313, %v1312
      %v1320 = vpack.c.b16 %v1315, %v1314
      %v1321 = vpack.c.b16 %v1317, %v1316
      %v1322 = vunpack.c.l.b16 %v1077
      %v1323 = vunpack.c.l.b16 %v1091
      %v1324 = vunpack.c.l.b16 %v1105
      %v1325 = vunpack.c.l.b16 %v1119
      %v1326 = vunpack.c.l.b16 %v1133
      %v1327 = vunpack.c.l.b16 %v1147
      %v1328 = vunpack.c.l.b16 %v1161
      %v1329 = vunpack.c.l.b16 %v1175
      %v1330 = vpack.c.b16 %v1323, %v1322
      %v1331 = vpack.c.b16 %v1325, %v1324
      %v1332 = vpack.c.b16 %v1327, %v1326
      %v1333 = vpack.c.b16 %v1329, %v1328
      %1334 = vrot.lane.b32.xlu0 %v1330, 8
      %v1335 = vpop.permute.xlu0 %1334
      %1336 = vrot.lane.b32.xlu0 %v1331, 8
      %v1337 = vpop.permute.xlu0 %1336
      %1338 = vrot.lane.b32.xlu0 %v1332, 8
      %v1339 = vpop.permute.xlu0 %1338
      %1340 = vrot.lane.b32.xlu0 %v1333, 8
      %v1341 = vpop.permute.xlu0 %1340
      %v1350 = vunpack.c.l.b16 %v1029
      %v1351 = vunpack.c.l.b16 %v1033
      %v1352 = vunpack.c.l.b16 %v1037
      %v1353 = vunpack.c.l.b16 %v1041
      %v1354 = vunpack.c.l.b16 %v1045
      %v1355 = vunpack.c.l.b16 %v1049
      %v1356 = vunpack.c.l.b16 %v1053
      %v1357 = vunpack.c.l.b16 %v1057
      %v1358 = vpack.c.b16 %v1351, %v1350
      %v1359 = vpack.c.b16 %v1353, %v1352
      %v1360 = vpack.c.b16 %v1355, %v1354
      %v1361 = vpack.c.b16 %v1357, %v1356
      %1362 = vrot.lane.b32.xlu0 %v1358, 12
      %v1363 = vpop.permute.xlu0 %1362
      %1364 = vrot.lane.b32.xlu0 %v1359, 12
      %v1365 = vpop.permute.xlu0 %1364
      %1366 = vrot.lane.b32.xlu0 %v1360, 12
      %v1367 = vpop.permute.xlu0 %1366
      %1368 = vrot.lane.b32.xlu0 %v1361, 12
      %v1369 = vpop.permute.xlu0 %1368
      %v1370 = vunpack.c.l.b16 %v1189
      %v1371 = vunpack.c.l.b16 %v1203
      %v1372 = vunpack.c.l.b16 %v1217
      %v1373 = vunpack.c.l.b16 %v1231
      %v1374 = vunpack.c.l.b16 %v1245
      %v1375 = vunpack.c.l.b16 %v1259
      %v1376 = vunpack.c.l.b16 %v1273
      %v1377 = vunpack.c.l.b16 %v1287
      %v1378 = vpack.c.b16 %v1371, %v1370
      %v1379 = vpack.c.b16 %v1373, %v1372
      %v1380 = vpack.c.b16 %v1375, %v1374
      %v1381 = vpack.c.b16 %v1377, %v1376
      %1382 = vrot.lane.b32.xlu0 %v1378, 20
      %v1383 = vpop.permute.xlu0 %1382
      %1384 = vrot.lane.b32.xlu0 %v1379, 20
      %v1385 = vpop.permute.xlu0 %1384
      %1386 = vrot.lane.b32.xlu0 %v1380, 20
      %v1387 = vpop.permute.xlu0 %1386
      %1388 = vrot.lane.b32.xlu0 %v1381, 20
      %v1389 = vpop.permute.xlu0 %1388
      %v1391 = vunpack.c.l.b16 %v1059
      %v1392 = vpack.c.b16 %v1312, %v1311
      %v1393 = vpack.c.b16 %v1314, %v1313
      %v1394 = vpack.c.b16 %v1316, %v1315
      %v1395 = vpack.c.b16 %v1391, %v1317
      %1396 = vrot.lane.b32.xlu0 %v1392, 24
      %v1397 = vpop.permute.xlu0 %1396
      %1398 = vrot.lane.b32.xlu0 %v1393, 24
      %v1399 = vpop.permute.xlu0 %1398
      %1400 = vrot.lane.b32.xlu0 %v1394, 24
      %v1401 = vpop.permute.xlu0 %1400
      %1402 = vrot.lane.b32.xlu0 %v1395, 24
      %v1403 = vpop.permute.xlu0 %1402
      %v1404 = vunpack.c.l.b16 %v1301
      %v1405 = vpack.c.b16 %v1324, %v1323
      %v1406 = vpack.c.b16 %v1326, %v1325
      %v1407 = vpack.c.b16 %v1328, %v1327
      %v1408 = vpack.c.b16 %v1404, %v1329
      %1409 = vrot.lane.b32.xlu0 %v1405, 32
      %v1410 = vpop.permute.xlu0 %1409
      %1411 = vrot.lane.b32.xlu0 %v1406, 32
      %v1412 = vpop.permute.xlu0 %1411
      %1413 = vrot.lane.b32.xlu0 %v1407, 32
      %v1414 = vpop.permute.xlu0 %1413
      %1415 = vrot.lane.b32.xlu0 %v1408, 32
      %v1416 = vpop.permute.xlu0 %1415
      %vm1417 = vcmask 31744
      %vm1422 = vcmask 64512
      %v1424 = vsel %vm1422, %v1318, %v1335
      %v1426 = vsel %vm1422, %v1319, %v1337
      %v1428 = vsel %vm1422, %v1320, %v1339
      %v1430 = vsel %vm1422, %v1321, %v1341
      %vm1431 = vcmask 97280
      %v1433 = vsel %vm1431, %v1424, %v1363
      %v1435 = vsel %vm1431, %v1426, %v1365
      %v1437 = vsel %vm1431, %v1428, %v1367
      %v1439 = vsel %vm1431, %v1430, %v1369
      %vm1440 = vcmask 130048
      %v1441 = vsel %vm1440, %v1433, %v1363
      %v1442 = vsel %vm1440, %v1435, %v1365
      %v1443 = vsel %vm1440, %v1437, %v1367
      %v1444 = vsel %vm1440, %v1439, %v1369
      %vm1445 = vcmask 162816
      %v1447 = vsel %vm1445, %v1441, %v1383
      %v1449 = vsel %vm1445, %v1442, %v1385
      %v1451 = vsel %vm1445, %v1443, %v1387
      %v1453 = vsel %vm1445, %v1444, %v1389
      %vm1454 = vcmask 195584
      %v1456 = vsel %vm1454, %v1447, %v1397
      %v1458 = vsel %vm1454, %v1449, %v1399
      %v1460 = vsel %vm1454, %v1451, %v1401
      %v1462 = vsel %vm1454, %v1453, %v1403
      %vm1463 = vcmask 228352
      %v1464 = vsel %vm1463, %v1456, %v1397
      %v1465 = vsel %vm1463, %v1458, %v1399
      %v1466 = vsel %vm1463, %v1460, %v1401
      %v1467 = vsel %vm1463, %v1462, %v1403
      %vm1468 = vcmask 261120
      %v1470 = vsel %vm1468, %v1464, %v1410
      %v1472 = vsel %vm1468, %v1465, %v1412
      %v1474 = vsel %vm1468, %v1466, %v1414
      %v1476 = vsel %vm1468, %v1467, %v1416
      %v1477 = vld [vmem:[%s4] sm:$0xf]
      %v1478 = vld [vmem:[%s4 + $0x4] sm:$0xf]
      %v1479 = vld [vmem:[%s4 + $0x8] sm:$0xf]
      %v1480 = vld [vmem:[%s4 + $0xc] sm:$0xf]
      %v1481 = vld [vmem:[%s4 + $0x10] sm:$0x3]
      %v1487 = vunpack.c.l.b16 %v1477
      %v1488 = vunpack.c.l.b16 %v1478
      %v1489 = vunpack.c.l.b16 %v1479
      %v1490 = vunpack.c.l.b16 %v1480
      %v1491 = vunpack.c.l.b16 %v1481
      %v1492 = vpack.c.b16 %v1488, %v1487
      %v1493 = vpack.c.b16 %v1490, %v1489
      %v1494 = vpack.c.b16 %v1491, %v1491
      %vm1497 = vcmask 293888
      %v1498 = vsel %vm1497, %v1470, 0
      %v1500 = vsel %vm1497, %v1472, 0
      %v1502 = vsel %vm1497, %v1474, 0
      %v1504 = vsel %vm1497, %v1476, 0
      %vm1506 = vcmask 1041408
      %v1508 = vsel %vm1506, %v1494, 0
      %1510 = vmatprep.subr.bf16.mxu0 0
      %1511 = vmatpush1.bf16.msra.mxu0 0
      %1512 = vmatprep.subr.bf16.mxu0 0
      %1513 = vmatpush1.bf16.msra.mxu0 0
      %1514 = vmatprep.subr.bf16.mxu0 0
      %1515 = vmatpush1.bf16.msra.mxu0 0
      %1516 = vmatprep.subr.bf16.mxu0 0
      %1517 = vmatpush1.bf16.msra.mxu0 0
      %1518 = vmatprep.subr.bf16.mxu0 0
      %1519 = vmatpush1.bf16.msra.mxu0 0
      %1520 = vmatprep.subr.bf16.mxu0 0
      %1521 = vmatpush1.bf16.msra.mxu0 %v1508
      %1522 = vmatprep.subr.bf16.mxu0 0
      %1523 = vmatpush1.bf16.msra.mxu0 %v1493
      %1524 = vmatprep.subr.bf16.mxu0 0
      %1525 = vmatpush1.bf16.msra.mxu0 %v1492
      %1526 = vmatprep.subr.bf16.mxu0 0
      %1527 = vmatpush2.bf16.msra.mxu0 0
      %1528 = vmatprep.subr.bf16.mxu0 0
      %1529 = vmatpush2.bf16.msra.mxu0 0
      %1530 = vmatprep.subr.bf16.mxu0 0
      %1531 = vmatpush2.bf16.msra.mxu0 0
      %1532 = vmatprep.subr.bf16.mxu0 0
      %1533 = vmatpush2.bf16.msra.mxu0 0
      %1534 = vmatprep.subr.bf16.mxu0 0
      %1535 = vmatpush2.bf16.msra.mxu0 0
      %1536 = vmatprep.subr.bf16.mxu0 0
      %1537 = vmatpush2.bf16.msra.mxu0 0
      %1538 = vmatprep.subr.bf16.mxu0 0
      %1539 = vmatpush2.bf16.msra.mxu0 0
      %1540 = vmatprep.subr.bf16.mxu0 0
      %1541 = vmatpush2.bf16.msra.mxu0 0
      %1542 = vmatprep.mubr.bf16.mxu0 0
      %1543 = vmatmul.mubr.bf16.gmra.mxu0 %v1498
      %v1544 = vpop.f32.mrf.mxu0
      %v1545 = vadd.f32 0.0, %v1544
      %v1546 = vpop.f32.mrf.mxu0
      %v1547 = vpop.f32.mrf.mxu0
      %v1548 = vadd.f32 0.0, %v1547
      %v1549 = vpop.f32.mrf.mxu0
      %1550 = vmatprep.mubr.bf16.mxu0 0
      %1551 = vmatmul.mubr.bf16.gmra.mxu0 %v1500
      %v1552 = vpop.f32.mrf.mxu0
      %v1553 = vadd.f32 0.0, %v1552
      %v1554 = vpop.f32.mrf.mxu0
      %v1555 = vpop.f32.mrf.mxu0
      %v1556 = vadd.f32 0.0, %v1555
      %v1557 = vpop.f32.mrf.mxu0
      %1558 = vmatprep.mubr.bf16.mxu0 0
      %1559 = vmatmul.mubr.bf16.gmra.mxu0 %v1502
      %v1560 = vpop.f32.mrf.mxu0
      %v1561 = vadd.f32 0.0, %v1560
      %v1562 = vpop.f32.mrf.mxu0
      %v1563 = vpop.f32.mrf.mxu0
      %v1564 = vadd.f32 0.0, %v1563
      %v1565 = vpop.f32.mrf.mxu0
      %1566 = vmatprep.mubr.bf16.mxu0 0
      %1567 = vmatmul.mubr.bf16.gmra.mxu0 %v1504
      %v1568 = vpop.f32.mrf.mxu0
      %v1569 = vadd.f32 0.0, %v1568
      %v1570 = vpop.f32.mrf.mxu0
      %v1571 = vpop.f32.mrf.mxu0
      %v1572 = vadd.f32 0.0, %v1571
      %v1573 = vpop.f32.mrf.mxu0
      %1574 = vdwg.mxu0
      %v1575 = vld [vmem:[%s342] sm:$0xff]
      %v1576 = vld [vmem:[%s342 + $0x10] sm:$0xff]
      %v1577 = vld [vmem:[%s342 + $0x20] sm:$0xff]
      %v1578 = vld [vmem:[%s342 + $0x30] sm:$0xff]
      %v1579 = vld [vmem:[%s342 + $0x40] sm:$0xff]
      %v1580 = vld [vmem:[%s342 + $0x50] sm:$0xff]
      %v1581 = vld [vmem:[%s342 + $0x60] sm:$0xff]
      %v1582 = vld [vmem:[%s342 + $0x70] sm:$0xff]
      %v1583 = vmul.f32 %v1575, %v452
      %v1584 = vmul.f32 %v1576, %v452
      %v1585 = vmul.f32 %v1577, %v452
      %v1586 = vmul.f32 %v1578, %v452
      %v1587 = vmul.f32 %v1579, %v452
      %v1588 = vmul.f32 %v1580, %v452
      %v1589 = vmul.f32 %v1581, %v452
      %v1590 = vmul.f32 %v1582, %v452
      %v1591 = vadd.f32 %v1583, %v474
      %v1592 = vadd.f32 %v1584, %v474
      %v1593 = vadd.f32 %v1585, %v474
      %v1594 = vadd.f32 %v1586, %v474
      %v1595 = vadd.f32 %v1587, %v474
      %v1596 = vadd.f32 %v1588, %v474
      %v1597 = vadd.f32 %v1589, %v474
      %v1598 = vadd.f32 %v1590, %v474
      %v1599 = vmax.f32 %v1591, 0.0
      %v1600 = vmax.f32 %v1592, 0.0
      %v1601 = vmax.f32 %v1593, 0.0
      %v1602 = vmax.f32 %v1594, 0.0
      %v1603 = vmax.f32 %v1595, 0.0
      %v1604 = vmax.f32 %v1596, 0.0
      %v1605 = vmax.f32 %v1597, 0.0
      %v1606 = vmax.f32 %v1598, 0.0
      %v1607 = vpack.c.bf16 %v1600, %v1599
      %v1608 = vpack.c.bf16 %v1602, %v1601
      %v1609 = vpack.c.bf16 %v1604, %v1603
      %v1610 = vpack.c.bf16 %v1606, %v1605
      %v1611 = vld [vmem:[%s8] sm:$0x3]
      %v1613 = vsel %vm1417, %v1607, 0
      %v1616 = vsel %vm1417, %v1608, 0
      %v1619 = vsel %vm1417, %v1609, 0
      %v1622 = vsel %vm1417, %v1610, 0
      %v1625 = vsel %vm1506, %v1611, 0
      %1627 = vmatprep.subr.bf16.mxu0 0
      %1628 = vmatpush1.bf16.msra.mxu0 0
      %1629 = vmatprep.subr.bf16.mxu0 0
      %1630 = vmatpush1.bf16.msra.mxu0 0
      %1631 = vmatprep.subr.bf16.mxu0 0
      %1632 = vmatpush1.bf16.msra.mxu0 0
      %1633 = vmatprep.subr.bf16.mxu0 0
      %1634 = vmatpush1.bf16.msra.mxu0 0
      %1635 = vmatprep.subr.bf16.mxu0 0
      %1636 = vmatpush1.bf16.msra.mxu0 0
      %1637 = vmatprep.subr.bf16.mxu0 0
      %1638 = vmatpush1.bf16.msra.mxu0 0
      %1639 = vmatprep.subr.bf16.mxu0 0
      %1640 = vmatpush1.bf16.msra.mxu0 0
      %1641 = vmatprep.subr.bf16.mxu0 0
      %1642 = vmatpush1.bf16.msra.mxu0 %v1625
      %1643 = vmatprep.subr.bf16.mxu0 0
      %1644 = vmatpush2.bf16.msra.mxu0 0
      %1645 = vmatprep.subr.bf16.mxu0 0
      %1646 = vmatpush2.bf16.msra.mxu0 0
      %1647 = vmatprep.subr.bf16.mxu0 0
      %1648 = vmatpush2.bf16.msra.mxu0 0
      %1649 = vmatprep.subr.bf16.mxu0 0
      %1650 = vmatpush2.bf16.msra.mxu0 0
      %1651 = vmatprep.subr.bf16.mxu0 0
      %1652 = vmatpush2.bf16.msra.mxu0 0
      %1653 = vmatprep.subr.bf16.mxu0 0
      %1654 = vmatpush2.bf16.msra.mxu0 0
      %1655 = vmatprep.subr.bf16.mxu0 0
      %1656 = vmatpush2.bf16.msra.mxu0 0
      %1657 = vmatprep.subr.bf16.mxu0 0
      %1658 = vmatpush2.bf16.msra.mxu0 0
      %1659 = vmatprep.mubr.bf16.mxu0 0
      %1660 = vmatmul.mubr.bf16.gmra.mxu0 %v1613
      %v1661 = vpop.f32.mrf.mxu0
      %v1662 = vadd.f32 0.0, %v1661
      %v1663 = vpop.f32.mrf.mxu0
      %v1664 = vpop.f32.mrf.mxu0
      %v1665 = vadd.f32 0.0, %v1664
      %v1666 = vpop.f32.mrf.mxu0
      %1667 = vmatprep.mubr.bf16.mxu0 0
      %1668 = vmatmul.mubr.bf16.gmra.mxu0 %v1616
      %v1669 = vpop.f32.mrf.mxu0
      %v1670 = vadd.f32 0.0, %v1669
      %v1671 = vpop.f32.mrf.mxu0
      %v1672 = vpop.f32.mrf.mxu0
      %v1673 = vadd.f32 0.0, %v1672
      %v1674 = vpop.f32.mrf.mxu0
      %1675 = vmatprep.mubr.bf16.mxu0 0
      %1676 = vmatmul.mubr.bf16.gmra.mxu0 %v1619
      %v1677 = vpop.f32.mrf.mxu0
      %v1678 = vadd.f32 0.0, %v1677
      %v1679 = vpop.f32.mrf.mxu0
      %v1680 = vpop.f32.mrf.mxu0
      %v1681 = vadd.f32 0.0, %v1680
      %v1682 = vpop.f32.mrf.mxu0
      %1683 = vmatprep.mubr.bf16.mxu0 0
      %1684 = vmatmul.mubr.bf16.gmra.mxu0 %v1622
      %v1685 = vpop.f32.mrf.mxu0
      %v1686 = vadd.f32 0.0, %v1685
      %v1687 = vpop.f32.mrf.mxu0
      %v1688 = vpop.f32.mrf.mxu0
      %v1689 = vadd.f32 0.0, %v1688
      %v1690 = vpop.f32.mrf.mxu0
      %1691 = vdwg.mxu0
      %v1692 = vld [vmem:[%s5] sm:$0x1]
      %v1693 = vld [vmem:[%s6] sm:$0x1]
      %v1695 = vlaneseq
      %v1696 = vshrl.u32 %v1695, 7
      %v1697 = vsub.s32 0, %v1696
      %v1698 = vrot.slane %v1692, %v1697
      %v1700 = vmul.f32 %v1545, %v1698
      %v1701 = vmul.f32 %v1548, %v1698
      %v1702 = vmul.f32 %v1553, %v1698
      %v1703 = vmul.f32 %v1556, %v1698
      %v1704 = vmul.f32 %v1561, %v1698
      %v1705 = vmul.f32 %v1564, %v1698
      %v1706 = vmul.f32 %v1569, %v1698
      %v1707 = vmul.f32 %v1572, %v1698
      %v1709 = vlaneseq
      %v1710 = vshrl.u32 %v1709, 7
      %v1711 = vsub.s32 0, %v1710
      %v1712 = vrot.slane %v1693, %v1711
      %v1714 = vadd.f32 %v1700, %v1712
      %v1715 = vadd.f32 %v1701, %v1712
      %v1716 = vadd.f32 %v1702, %v1712
      %v1717 = vadd.f32 %v1703, %v1712
      %v1718 = vadd.f32 %v1704, %v1712
      %v1719 = vadd.f32 %v1705, %v1712
      %v1720 = vadd.f32 %v1706, %v1712
      %v1721 = vadd.f32 %v1707, %v1712
      %v1722 = vmax.f32 %v1714, 0.0
      %v1723 = vmax.f32 %v1715, 0.0
      %v1724 = vmax.f32 %v1716, 0.0
      %v1725 = vmax.f32 %v1717, 0.0
      %v1726 = vmax.f32 %v1718, 0.0
      %v1727 = vmax.f32 %v1719, 0.0
      %v1728 = vmax.f32 %v1720, 0.0
      %v1729 = vmax.f32 %v1721, 0.0
      %1730 = vst.msk [vmem:[#allocation3] sm:$0xf] %vm356, 0
      %vm1731 = vcmask 57344
      %1732 = vst.msk [vmem:[#allocation3 + $0x4] sm:$0x1] %vm1731, 0
      %1733 = vst.msk [vmem:[#allocation3 + $0x8] sm:$0xf] %vm356, 0
      %1734 = vst.msk [vmem:[#allocation3 + $0xc] sm:$0x1] %vm1731, 0
      %1735 = vst.msk [vmem:[#allocation3 + $0x10] sm:$0xf] %vm356, 0
      %1736 = vst.msk [vmem:[#allocation3 + $0x14] sm:$0x1] %vm1731, 0
      %1737 = vst.msk [vmem:[#allocation3 + $0x18] sm:$0xf] %vm356, 0
      %1738 = vst.msk [vmem:[#allocation3 + $0x1c] sm:$0x1] %vm1731, 0
      %1739 = vst.msk [vmem:[#allocation3 + $0x20] sm:$0xf] %vm356, 0
      %1740 = vst.msk [vmem:[#allocation3 + $0x24] sm:$0x1] %vm1731, 0
      %1741 = vst.msk [vmem:[#allocation3 + $0x28] sm:$0xf] %vm356, 0
      %1742 = vst.msk [vmem:[#allocation3 + $0x2c] sm:$0x1] %vm1731, 0
      %1743 = vst.msk [vmem:[#allocation3 + $0x30] sm:$0xf] %vm356, 0
      %1744 = vst.msk [vmem:[#allocation3 + $0x34] sm:$0x1] %vm1731, 0
      %1745 = vst.msk [vmem:[#allocation3 + $0x38] sm:$0xf] %vm356, 0
      %1746 = vst.msk [vmem:[#allocation3 + $0x3c] sm:$0x1] %vm1731, 0
      %1747 = vst.msk [vmem:[#allocation3 + $0x40] sm:$0xf] %vm356, 0
      %1748 = vst.msk [vmem:[#allocation3 + $0x44] sm:$0x1] %vm1731, 0
      %1749 = vst.msk [vmem:[#allocation3 + $0x48] sm:$0xf] %vm356, 0
      %1750 = vst.msk [vmem:[#allocation3 + $0x4c] sm:$0x1] %vm1731, 0
      %v1751 = vpack.c.bf16 %v1722, %v1722
      %v1752 = vpack.c.bf16 %v1723, %v1723
      %v1753 = vpack.c.bf16 %v1724, %v1724
      %v1754 = vpack.c.bf16 %v1725, %v1725
      %v1755 = vpack.c.bf16 %v1726, %v1726
      %v1756 = vpack.c.bf16 %v1727, %v1727
      %v1757 = vpack.c.bf16 %v1728, %v1728
      %v1758 = vpack.c.bf16 %v1729, %v1729
      %v1767 = vunpack.c.l.b16 %v1751
      %v1768 = vunpack.c.l.b16 %v1752
      %v1769 = vunpack.c.l.b16 %v1753
      %v1770 = vunpack.c.l.b16 %v1754
      %v1771 = vunpack.c.l.b16 %v1755
      %v1772 = vunpack.c.l.b16 %v1756
      %v1773 = vunpack.c.l.b16 %v1757
      %v1774 = vunpack.c.l.b16 %v1758
      %v1775 = vpack.c.b16 %v1767, %v1767
      %v1776 = vpack.c.b16 %v1768, %v1768
      %v1777 = vpack.c.b16 %v1769, %v1769
      %v1778 = vpack.c.b16 %v1770, %v1770
      %v1779 = vpack.c.b16 %v1771, %v1771
      %v1780 = vpack.c.b16 %v1772, %v1772
      %v1781 = vpack.c.b16 %v1773, %v1773
      %v1782 = vpack.c.b16 %v1774, %v1774
      %v1784 = vshrl.u32 %v1775, 16
      %v1786 = vrot.slane %v1784, 7
      %v1787 = vshll.u32 %v1775, 16
      %v1789 = vor.u32 %v1786, %v1787
      %v1790 = vrot.slane %v1786, 4
      %v1792 = vshrl.u32 %v1776, 16
      %v1794 = vrot.slane %v1792, 7
      %v1795 = vshll.u32 %v1776, 16
      %v1797 = vor.u32 %v1794, %v1795
      %v1798 = vrot.slane %v1794, 4
      %v1800 = vshrl.u32 %v1777, 16
      %v1802 = vrot.slane %v1800, 7
      %v1803 = vshll.u32 %v1777, 16
      %v1805 = vor.u32 %v1802, %v1803
      %v1806 = vrot.slane %v1802, 4
      %v1808 = vshrl.u32 %v1778, 16
      %v1810 = vrot.slane %v1808, 7
      %v1811 = vshll.u32 %v1778, 16
      %v1813 = vor.u32 %v1810, %v1811
      %v1814 = vrot.slane %v1810, 4
      %v1816 = vshrl.u32 %v1779, 16
      %v1818 = vrot.slane %v1816, 7
      %v1819 = vshll.u32 %v1779, 16
      %v1821 = vor.u32 %v1818, %v1819
      %v1822 = vrot.slane %v1818, 4
      %v1824 = vshrl.u32 %v1780, 16
      %v1826 = vrot.slane %v1824, 7
      %v1827 = vshll.u32 %v1780, 16
      %v1829 = vor.u32 %v1826, %v1827
      %v1830 = vrot.slane %v1826, 4
      %v1832 = vshrl.u32 %v1781, 16
      %v1834 = vrot.slane %v1832, 7
      %v1835 = vshll.u32 %v1781, 16
      %v1837 = vor.u32 %v1834, %v1835
      %v1838 = vrot.slane %v1834, 4
      %v1840 = vshrl.u32 %v1782, 16
      %v1842 = vrot.slane %v1840, 7
      %v1843 = vshll.u32 %v1782, 16
      %v1845 = vor.u32 %v1842, %v1843
      %v1846 = vrot.slane %v1842, 4
      %s1863 = scalar_lea.vmem [#allocation3], 8
      %vm1864 = vcmask 60416
      %vm1865 = vmand %vm1864, %vm927
      %v1866 = vld [vmem:[%s1863] sm:$0xf]
      %v1867 = vsel %vm1865, %v1789, %v1866
      %1868 = vst [vmem:[%s1863] sm:$0xf] %v1867
      %v1869 = vld [vmem:[%s1863 + $0x4] sm:$0x1]
      %v1870 = vsel %vm360, %v1790, %v1869
      %1871 = vst [vmem:[%s1863 + $0x4] sm:$0x1] %v1870
      %v1872 = vld [vmem:[%s1863 + $0x8] sm:$0xf]
      %v1873 = vsel %vm1865, %v1797, %v1872
      %1874 = vst [vmem:[%s1863 + $0x8] sm:$0xf] %v1873
      %v1875 = vld [vmem:[%s1863 + $0xc] sm:$0x1]
      %v1876 = vsel %vm360, %v1798, %v1875
      %1877 = vst [vmem:[%s1863 + $0xc] sm:$0x1] %v1876
      %v1878 = vld [vmem:[%s1863 + $0x10] sm:$0xf]
      %v1879 = vsel %vm1865, %v1805, %v1878
      %1880 = vst [vmem:[%s1863 + $0x10] sm:$0xf] %v1879
      %v1881 = vld [vmem:[%s1863 + $0x14] sm:$0x1]
      %v1882 = vsel %vm360, %v1806, %v1881
      %1883 = vst [vmem:[%s1863 + $0x14] sm:$0x1] %v1882
      %v1884 = vld [vmem:[%s1863 + $0x18] sm:$0xf]
      %v1885 = vsel %vm1865, %v1813, %v1884
      %1886 = vst [vmem:[%s1863 + $0x18] sm:$0xf] %v1885
      %v1887 = vld [vmem:[%s1863 + $0x1c] sm:$0x1]
      %v1888 = vsel %vm360, %v1814, %v1887
      %1889 = vst [vmem:[%s1863 + $0x1c] sm:$0x1] %v1888
      %v1890 = vld [vmem:[%s1863 + $0x20] sm:$0xf]
      %v1891 = vsel %vm1865, %v1821, %v1890
      %1892 = vst [vmem:[%s1863 + $0x20] sm:$0xf] %v1891
      %v1893 = vld [vmem:[%s1863 + $0x24] sm:$0x1]
      %v1894 = vsel %vm360, %v1822, %v1893
      %1895 = vst [vmem:[%s1863 + $0x24] sm:$0x1] %v1894
      %v1896 = vld [vmem:[%s1863 + $0x28] sm:$0xf]
      %v1897 = vsel %vm1865, %v1829, %v1896
      %1898 = vst [vmem:[%s1863 + $0x28] sm:$0xf] %v1897
      %v1899 = vld [vmem:[%s1863 + $0x2c] sm:$0x1]
      %v1900 = vsel %vm360, %v1830, %v1899
      %1901 = vst [vmem:[%s1863 + $0x2c] sm:$0x1] %v1900
      %v1902 = vld [vmem:[%s1863 + $0x30] sm:$0xf]
      %v1903 = vsel %vm1865, %v1837, %v1902
      %1904 = vst [vmem:[%s1863 + $0x30] sm:$0xf] %v1903
      %v1905 = vld [vmem:[%s1863 + $0x34] sm:$0x1]
      %v1906 = vsel %vm360, %v1838, %v1905
      %1907 = vst [vmem:[%s1863 + $0x34] sm:$0x1] %v1906
      %v1908 = vld [vmem:[%s1863 + $0x38] sm:$0xf]
      %v1909 = vsel %vm1865, %v1845, %v1908
      %1910 = vst [vmem:[%s1863 + $0x38] sm:$0xf] %v1909
      %v1911 = vld [vmem:[%s1863 + $0x3c] sm:$0x1]
      %v1912 = vsel %vm360, %v1846, %v1911
      %1913 = vst [vmem:[%s1863 + $0x3c] sm:$0x1] %v1912
      %v1914 = vld [vmem:[#allocation3] sm:$0xf]
      %v1915 = vld [vmem:[#allocation3 + $0x4] sm:$0x1]
      %v1916 = vld [vmem:[#allocation3 + $0x8] sm:$0xf]
      %v1917 = vld [vmem:[#allocation3 + $0xc] sm:$0x1]
      %v1918 = vld [vmem:[#allocation3 + $0x10] sm:$0xf]
      %v1919 = vld [vmem:[#allocation3 + $0x14] sm:$0x1]
      %v1920 = vld [vmem:[#allocation3 + $0x18] sm:$0xf]
      %v1921 = vld [vmem:[#allocation3 + $0x1c] sm:$0x1]
      %v1922 = vld [vmem:[#allocation3 + $0x20] sm:$0xf]
      %v1923 = vld [vmem:[#allocation3 + $0x24] sm:$0x1]
      %v1924 = vld [vmem:[#allocation3 + $0x28] sm:$0xf]
      %v1925 = vld [vmem:[#allocation3 + $0x2c] sm:$0x1]
      %v1926 = vld [vmem:[#allocation3 + $0x30] sm:$0xf]
      %v1927 = vld [vmem:[#allocation3 + $0x34] sm:$0x1]
      %v1928 = vld [vmem:[#allocation3 + $0x38] sm:$0xf]
      %v1929 = vld [vmem:[#allocation3 + $0x3c] sm:$0x1]
      %v1930 = vld [vmem:[#allocation3 + $0x40] sm:$0xf]
      %v1931 = vld [vmem:[#allocation3 + $0x44] sm:$0x1]
      %v1932 = vld [vmem:[#allocation3 + $0x48] sm:$0xf]
      %v1933 = vld [vmem:[#allocation3 + $0x4c] sm:$0x1]
      %v1935 = vshrl.u32 %v1914, 16
      %v1937 = vrot.slane %v1935, 4
      %v1938 = vshll.u32 %v1914, 16
      %v1940 = vrot.slane %v1938, 5
      %v1941 = vor.u32 %v1937, %v1940
      %v1942 = vrot.slane %v1941, 4
      %v1944 = vshll.u32 %v1915, 16
      %v1946 = vrot.slane %v1944, 5
      %v1947 = vsel %vm1063, %v1942, %v1946
      %v1949 = vshrl.u32 %v1916, 16
      %v1951 = vrot.slane %v1949, 4
      %v1952 = vshll.u32 %v1916, 16
      %v1954 = vrot.slane %v1952, 5
      %v1955 = vor.u32 %v1951, %v1954
      %v1956 = vrot.slane %v1955, 4
      %v1958 = vshll.u32 %v1917, 16
      %v1960 = vrot.slane %v1958, 5
      %v1961 = vsel %vm1063, %v1956, %v1960
      %v1963 = vshrl.u32 %v1918, 16
      %v1965 = vrot.slane %v1963, 4
      %v1966 = vshll.u32 %v1918, 16
      %v1968 = vrot.slane %v1966, 5
      %v1969 = vor.u32 %v1965, %v1968
      %v1970 = vrot.slane %v1969, 4
      %v1972 = vshll.u32 %v1919, 16
      %v1974 = vrot.slane %v1972, 5
      %v1975 = vsel %vm1063, %v1970, %v1974
      %v1977 = vshrl.u32 %v1920, 16
      %v1979 = vrot.slane %v1977, 4
      %v1980 = vshll.u32 %v1920, 16
      %v1982 = vrot.slane %v1980, 5
      %v1983 = vor.u32 %v1979, %v1982
      %v1984 = vrot.slane %v1983, 4
      %v1986 = vshll.u32 %v1921, 16
      %v1988 = vrot.slane %v1986, 5
      %v1989 = vsel %vm1063, %v1984, %v1988
      %v1991 = vshrl.u32 %v1922, 16
      %v1993 = vrot.slane %v1991, 4
      %v1994 = vshll.u32 %v1922, 16
      %v1996 = vrot.slane %v1994, 5
      %v1997 = vor.u32 %v1993, %v1996
      %v1998 = vrot.slane %v1997, 4
      %v2000 = vshll.u32 %v1923, 16
      %v2002 = vrot.slane %v2000, 5
      %v2003 = vsel %vm1063, %v1998, %v2002
      %v2005 = vshrl.u32 %v1924, 16
      %v2007 = vrot.slane %v2005, 4
      %v2008 = vshll.u32 %v1924, 16
      %v2010 = vrot.slane %v2008, 5
      %v2011 = vor.u32 %v2007, %v2010
      %v2012 = vrot.slane %v2011, 4
      %v2014 = vshll.u32 %v1925, 16
      %v2016 = vrot.slane %v2014, 5
      %v2017 = vsel %vm1063, %v2012, %v2016
      %v2019 = vshrl.u32 %v1926, 16
      %v2021 = vrot.slane %v2019, 4
      %v2022 = vshll.u32 %v1926, 16
      %v2024 = vrot.slane %v2022, 5
      %v2025 = vor.u32 %v2021, %v2024
      %v2026 = vrot.slane %v2025, 4
      %v2028 = vshll.u32 %v1927, 16
      %v2030 = vrot.slane %v2028, 5
      %v2031 = vsel %vm1063, %v2026, %v2030
      %v2033 = vshrl.u32 %v1928, 16
      %v2035 = vrot.slane %v2033, 4
      %v2036 = vshll.u32 %v1928, 16
      %v2038 = vrot.slane %v2036, 5
      %v2039 = vor.u32 %v2035, %v2038
      %v2040 = vrot.slane %v2039, 4
      %v2042 = vshll.u32 %v1929, 16
      %v2044 = vrot.slane %v2042, 5
      %v2045 = vsel %vm1063, %v2040, %v2044
      %vm2062 = vcmask 1042432
      %vm2063 = vcmask 1046532
      %vm2064 = vmor %vm2062, %vm2063
      %v2065 = vrot.slane %v1914, 5
      %v2066 = vrot.slane %v2065, 4
      %v2067 = vrot.slane %v1915, 5
      %v2068 = vsel %vm2064, %v2066, %v2067
      %v2069 = vrot.slane %v1916, 5
      %v2070 = vrot.slane %v2069, 4
      %v2071 = vrot.slane %v1917, 5
      %v2072 = vsel %vm2064, %v2070, %v2071
      %v2073 = vrot.slane %v1918, 5
      %v2074 = vrot.slane %v2073, 4
      %v2075 = vrot.slane %v1919, 5
      %v2076 = vsel %vm2064, %v2074, %v2075
      %v2077 = vrot.slane %v1920, 5
      %v2078 = vrot.slane %v2077, 4
      %v2079 = vrot.slane %v1921, 5
      %v2080 = vsel %vm2064, %v2078, %v2079
      %v2081 = vrot.slane %v1922, 5
      %v2082 = vrot.slane %v2081, 4
      %v2083 = vrot.slane %v1923, 5
      %v2084 = vsel %vm2064, %v2082, %v2083
      %v2085 = vrot.slane %v1924, 5
      %v2086 = vrot.slane %v2085, 4
      %v2087 = vrot.slane %v1925, 5
      %v2088 = vsel %vm2064, %v2086, %v2087
      %v2089 = vrot.slane %v1926, 5
      %v2090 = vrot.slane %v2089, 4
      %v2091 = vrot.slane %v1927, 5
      %v2092 = vsel %vm2064, %v2090, %v2091
      %v2093 = vrot.slane %v1928, 5
      %v2094 = vrot.slane %v2093, 4
      %v2095 = vrot.slane %v1929, 5
      %v2096 = vsel %vm2064, %v2094, %v2095
      %v2098 = vshrl.u32 %v1930, 16
      %v2100 = vrot.slane %v2098, 4
      %v2101 = vshll.u32 %v1930, 16
      %v2103 = vrot.slane %v2101, 5
      %v2104 = vor.u32 %v2100, %v2103
      %v2105 = vrot.slane %v2104, 4
      %v2107 = vshll.u32 %v1931, 16
      %v2109 = vrot.slane %v2107, 5
      %v2110 = vsel %vm1063, %v2105, %v2109
      %v2113 = vrot.slane %v1930, 5
      %v2114 = vrot.slane %v2113, 4
      %v2115 = vrot.slane %v1931, 5
      %v2116 = vsel %vm2064, %v2114, %v2115
      %v2118 = vshrl.u32 %v1932, 16
      %v2120 = vrot.slane %v2118, 4
      %v2121 = vshll.u32 %v1932, 16
      %v2123 = vrot.slane %v2121, 5
      %v2124 = vor.u32 %v2120, %v2123
      %v2125 = vrot.slane %v2124, 4
      %v2127 = vshll.u32 %v1933, 16
      %v2129 = vrot.slane %v2127, 5
      %v2130 = vsel %vm1063, %v2125, %v2129
      %v2133 = vrot.slane %v1932, 5
      %v2134 = vrot.slane %v2133, 4
      %v2135 = vrot.slane %v1933, 5
      %v2136 = vsel %vm2064, %v2134, %v2135
      %v2137 = vunpack.c.l.b16 %v1914
      %v2138 = vunpack.c.l.b16 %v1916
      %v2139 = vunpack.c.l.b16 %v1918
      %v2140 = vunpack.c.l.b16 %v1920
      %v2141 = vunpack.c.l.b16 %v1922
      %v2142 = vunpack.c.l.b16 %v1924
      %v2143 = vunpack.c.l.b16 %v1926
      %v2144 = vunpack.c.l.b16 %v1928
      %v2145 = vpack.c.b16 %v2138, %v2137
      %v2146 = vpack.c.b16 %v2140, %v2139
      %v2147 = vpack.c.b16 %v2142, %v2141
      %v2148 = vpack.c.b16 %v2144, %v2143
      %v2149 = vunpack.c.l.b16 %v1947
      %v2150 = vunpack.c.l.b16 %v1961
      %v2151 = vunpack.c.l.b16 %v1975
      %v2152 = vunpack.c.l.b16 %v1989
      %v2153 = vunpack.c.l.b16 %v2003
      %v2154 = vunpack.c.l.b16 %v2017
      %v2155 = vunpack.c.l.b16 %v2031
      %v2156 = vunpack.c.l.b16 %v2045
      %v2157 = vpack.c.b16 %v2150, %v2149
      %v2158 = vpack.c.b16 %v2152, %v2151
      %v2159 = vpack.c.b16 %v2154, %v2153
      %v2160 = vpack.c.b16 %v2156, %v2155
      %2161 = vrot.lane.b32.xlu0 %v2157, 8
      %v2162 = vpop.permute.xlu0 %2161
      %2163 = vrot.lane.b32.xlu0 %v2158, 8
      %v2164 = vpop.permute.xlu0 %2163
      %2165 = vrot.lane.b32.xlu0 %v2159, 8
      %v2166 = vpop.permute.xlu0 %2165
      %2167 = vrot.lane.b32.xlu0 %v2160, 8
      %v2168 = vpop.permute.xlu0 %2167
      %v2169 = vunpack.c.l.b16 %v2068
      %v2170 = vunpack.c.l.b16 %v2072
      %v2171 = vunpack.c.l.b16 %v2076
      %v2172 = vunpack.c.l.b16 %v2080
      %v2173 = vunpack.c.l.b16 %v2084
      %v2174 = vunpack.c.l.b16 %v2088
      %v2175 = vunpack.c.l.b16 %v2092
      %v2176 = vunpack.c.l.b16 %v2096
      %v2177 = vpack.c.b16 %v2170, %v2169
      %v2178 = vpack.c.b16 %v2172, %v2171
      %v2179 = vpack.c.b16 %v2174, %v2173
      %v2180 = vpack.c.b16 %v2176, %v2175
      %2181 = vrot.lane.b32.xlu0 %v2177, 16
      %v2182 = vpop.permute.xlu0 %2181
      %2183 = vrot.lane.b32.xlu0 %v2178, 16
      %v2184 = vpop.permute.xlu0 %2183
      %2185 = vrot.lane.b32.xlu0 %v2179, 16
      %v2186 = vpop.permute.xlu0 %2185
      %2187 = vrot.lane.b32.xlu0 %v2180, 16
      %v2188 = vpop.permute.xlu0 %2187
      %v2189 = vunpack.c.l.b16 %v1930
      %v2190 = vpack.c.b16 %v2139, %v2138
      %v2191 = vpack.c.b16 %v2141, %v2140
      %v2192 = vpack.c.b16 %v2143, %v2142
      %v2193 = vpack.c.b16 %v2189, %v2144
      %2194 = vrot.lane.b32.xlu0 %v2190, 24
      %v2195 = vpop.permute.xlu0 %2194
      %2196 = vrot.lane.b32.xlu0 %v2191, 24
      %v2197 = vpop.permute.xlu0 %2196
      %2198 = vrot.lane.b32.xlu0 %v2192, 24
      %v2199 = vpop.permute.xlu0 %2198
      %2200 = vrot.lane.b32.xlu0 %v2193, 24
      %v2201 = vpop.permute.xlu0 %2200
      %v2202 = vunpack.c.l.b16 %v2110
      %v2203 = vpack.c.b16 %v2151, %v2150
      %v2204 = vpack.c.b16 %v2153, %v2152
      %v2205 = vpack.c.b16 %v2155, %v2154
      %v2206 = vpack.c.b16 %v2202, %v2156
      %2207 = vrot.lane.b32.xlu0 %v2203, 32
      %v2208 = vpop.permute.xlu0 %2207
      %2209 = vrot.lane.b32.xlu0 %v2204, 32
      %v2210 = vpop.permute.xlu0 %2209
      %2211 = vrot.lane.b32.xlu0 %v2205, 32
      %v2212 = vpop.permute.xlu0 %2211
      %2213 = vrot.lane.b32.xlu0 %v2206, 32
      %v2214 = vpop.permute.xlu0 %2213
      %v2215 = vunpack.c.l.b16 %v2116
      %v2216 = vpack.c.b16 %v2171, %v2170
      %v2217 = vpack.c.b16 %v2173, %v2172
      %v2218 = vpack.c.b16 %v2175, %v2174
      %v2219 = vpack.c.b16 %v2215, %v2176
      %2220 = vrot.lane.b32.xlu0 %v2216, 40
      %v2221 = vpop.permute.xlu0 %2220
      %2222 = vrot.lane.b32.xlu0 %v2217, 40
      %v2223 = vpop.permute.xlu0 %2222
      %2224 = vrot.lane.b32.xlu0 %v2218, 40
      %v2225 = vpop.permute.xlu0 %2224
      %2226 = vrot.lane.b32.xlu0 %v2219, 40
      %v2227 = vpop.permute.xlu0 %2226
      %v2228 = vunpack.c.l.b16 %v1932
      %v2229 = vpack.c.b16 %v2228, %v2189
      %2230 = vrot.lane.b32.xlu0 %v2146, 48
      %v2231 = vpop.permute.xlu0 %2230
      %2232 = vrot.lane.b32.xlu0 %v2147, 48
      %v2233 = vpop.permute.xlu0 %2232
      %2234 = vrot.lane.b32.xlu0 %v2148, 48
      %v2235 = vpop.permute.xlu0 %2234
      %2236 = vrot.lane.b32.xlu0 %v2229, 48
      %v2237 = vpop.permute.xlu0 %2236
      %v2238 = vunpack.c.l.b16 %v2130
      %v2239 = vpack.c.b16 %v2238, %v2202
      %2240 = vrot.lane.b32.xlu0 %v2158, 56
      %v2241 = vpop.permute.xlu0 %2240
      %2242 = vrot.lane.b32.xlu0 %v2159, 56
      %v2243 = vpop.permute.xlu0 %2242
      %2244 = vrot.lane.b32.xlu0 %v2160, 56
      %v2245 = vpop.permute.xlu0 %2244
      %2246 = vrot.lane.b32.xlu0 %v2239, 56
      %v2247 = vpop.permute.xlu0 %2246
      %v2248 = vunpack.c.l.b16 %v2136
      %v2249 = vpack.c.b16 %v2248, %v2215
      %2250 = vrot.lane.b32.xlu0 %v2178, 64
      %v2251 = vpop.permute.xlu0 %2250
      %2252 = vrot.lane.b32.xlu0 %v2179, 64
      %v2253 = vpop.permute.xlu0 %2252
      %2254 = vrot.lane.b32.xlu0 %v2180, 64
      %v2255 = vpop.permute.xlu0 %2254
      %2256 = vrot.lane.b32.xlu0 %v2249, 64
      %v2257 = vpop.permute.xlu0 %2256
      %v2260 = vsel %vm1422, %v2145, %v2162
      %v2263 = vsel %vm1422, %v2146, %v2164
      %v2266 = vsel %vm1422, %v2147, %v2166
      %v2269 = vsel %vm1422, %v2148, %v2168
      %v2271 = vsel %vm1440, %v2260, %v2182
      %v2273 = vsel %vm1440, %v2263, %v2184
      %v2275 = vsel %vm1440, %v2266, %v2186
      %v2277 = vsel %vm1440, %v2269, %v2188
      %v2279 = vsel %vm1454, %v2271, %v2195
      %v2281 = vsel %vm1454, %v2273, %v2197
      %v2283 = vsel %vm1454, %v2275, %v2199
      %v2285 = vsel %vm1454, %v2277, %v2201
      %v2287 = vsel %vm1468, %v2279, %v2208
      %v2289 = vsel %vm1468, %v2281, %v2210
      %v2291 = vsel %vm1468, %v2283, %v2212
      %v2293 = vsel %vm1468, %v2285, %v2214
      %vm2294 = vcmask 326656
      %v2296 = vsel %vm2294, %v2287, %v2221
      %v2298 = vsel %vm2294, %v2289, %v2223
      %v2300 = vsel %vm2294, %v2291, %v2225
      %v2302 = vsel %vm2294, %v2293, %v2227
      %vm2303 = vcmask 392192
      %v2305 = vsel %vm2303, %v2296, %v2231
      %v2307 = vsel %vm2303, %v2298, %v2233
      %v2309 = vsel %vm2303, %v2300, %v2235
      %v2311 = vsel %vm2303, %v2302, %v2237
      %vm2312 = vcmask 457728
      %v2314 = vsel %vm2312, %v2305, %v2241
      %v2316 = vsel %vm2312, %v2307, %v2243
      %v2318 = vsel %vm2312, %v2309, %v2245
      %v2320 = vsel %vm2312, %v2311, %v2247
      %vm2321 = vcmask 523264
      %v2323 = vsel %vm2321, %v2314, %v2251
      %v2325 = vsel %vm2321, %v2316, %v2253
      %v2327 = vsel %vm2321, %v2318, %v2255
      %v2329 = vsel %vm2321, %v2320, %v2257
      %v2330 = vld [vmem:[%s7] sm:$0xf]
      %v2331 = vld [vmem:[%s7 + $0x4] sm:$0xf]
      %v2332 = vld [vmem:[%s7 + $0x8] sm:$0xf]
      %v2333 = vld [vmem:[%s7 + $0xc] sm:$0xf]
      %v2334 = vld [vmem:[%s7 + $0x10] sm:$0xf]
      %v2335 = vld [vmem:[%s7 + $0x14] sm:$0xf]
      %v2336 = vld [vmem:[%s7 + $0x18] sm:$0xf]
      %v2337 = vld [vmem:[%s7 + $0x1c] sm:$0xf]
      %v2338 = vld [vmem:[%s7 + $0x20] sm:$0xf]
      %v2348 = vunpack.c.l.b16 %v2330
      %v2349 = vunpack.c.l.b16 %v2331
      %v2350 = vunpack.c.l.b16 %v2332
      %v2351 = vunpack.c.l.b16 %v2333
      %v2352 = vunpack.c.l.b16 %v2334
      %v2353 = vunpack.c.l.b16 %v2335
      %v2354 = vunpack.c.l.b16 %v2336
      %v2355 = vunpack.c.l.b16 %v2337
      %v2356 = vunpack.c.l.b16 %v2338
      %v2357 = vpack.c.b16 %v2349, %v2348
      %v2358 = vpack.c.b16 %v2351, %v2350
      %v2359 = vpack.c.b16 %v2353, %v2352
      %v2360 = vpack.c.b16 %v2355, %v2354
      %v2361 = vpack.c.b16 %v2356, %v2356
      %vm2366 = vcmask 588800
      %v2367 = vsel %vm2366, %v2323, 0
      %v2369 = vsel %vm2366, %v2325, 0
      %v2371 = vsel %vm2366, %v2327, 0
      %v2373 = vsel %vm2366, %v2329, 0
      %vm2375 = vcmask 1043456
      %v2377 = vsel %vm2375, %v2361, 0
      %2379 = vmatprep.subr.bf16.mxu0 0
      %2380 = vmatpush1.bf16.msra.mxu0 0
      %2381 = vmatprep.subr.bf16.mxu0 0
      %2382 = vmatpush1.bf16.msra.mxu0 0
      %2383 = vmatprep.subr.bf16.mxu0 0
      %2384 = vmatpush1.bf16.msra.mxu0 0
      %2385 = vmatprep.subr.bf16.mxu0 0
      %2386 = vmatpush1.bf16.msra.mxu0 %v2377
      %2387 = vmatprep.subr.bf16.mxu0 0
      %2388 = vmatpush1.bf16.msra.mxu0 %v2360
      %2389 = vmatprep.subr.bf16.mxu0 0
      %2390 = vmatpush1.bf16.msra.mxu0 %v2359
      %2391 = vmatprep.subr.bf16.mxu0 0
      %2392 = vmatpush1.bf16.msra.mxu0 %v2358
      %2393 = vmatprep.subr.bf16.mxu0 0
      %2394 = vmatpush1.bf16.msra.mxu0 %v2357
      %2395 = vmatprep.subr.bf16.mxu0 0
      %2396 = vmatpush2.bf16.msra.mxu0 0
      %2397 = vmatprep.subr.bf16.mxu0 0
      %2398 = vmatpush2.bf16.msra.mxu0 0
      %2399 = vmatprep.subr.bf16.mxu0 0
      %2400 = vmatpush2.bf16.msra.mxu0 0
      %2401 = vmatprep.subr.bf16.mxu0 0
      %2402 = vmatpush2.bf16.msra.mxu0 0
      %2403 = vmatprep.subr.bf16.mxu0 0
      %2404 = vmatpush2.bf16.msra.mxu0 0
      %2405 = vmatprep.subr.bf16.mxu0 0
      %2406 = vmatpush2.bf16.msra.mxu0 0
      %2407 = vmatprep.subr.bf16.mxu0 0
      %2408 = vmatpush2.bf16.msra.mxu0 0
      %2409 = vmatprep.subr.bf16.mxu0 0
      %2410 = vmatpush2.bf16.msra.mxu0 0
      %2411 = vmatprep.mubr.bf16.mxu0 0
      %2412 = vmatmul.mubr.bf16.gmra.mxu0 %v2367
      %v2413 = vpop.f32.mrf.mxu0
      %v2414 = vadd.f32 %v1662, %v2413
      %v2415 = vpop.f32.mrf.mxu0
      %v2416 = vpop.f32.mrf.mxu0
      %v2417 = vadd.f32 %v1665, %v2416
      %v2418 = vpop.f32.mrf.mxu0
      %2419 = vmatprep.mubr.bf16.mxu0 0
      %2420 = vmatmul.mubr.bf16.gmra.mxu0 %v2369
      %v2421 = vpop.f32.mrf.mxu0
      %v2422 = vadd.f32 %v1670, %v2421
      %v2423 = vpop.f32.mrf.mxu0
      %v2424 = vpop.f32.mrf.mxu0
      %v2425 = vadd.f32 %v1673, %v2424
      %v2426 = vpop.f32.mrf.mxu0
      %2427 = vmatprep.mubr.bf16.mxu0 0
      %2428 = vmatmul.mubr.bf16.gmra.mxu0 %v2371
      %v2429 = vpop.f32.mrf.mxu0
      %v2430 = vadd.f32 %v1678, %v2429
      %v2431 = vpop.f32.mrf.mxu0
      %v2432 = vpop.f32.mrf.mxu0
      %v2433 = vadd.f32 %v1681, %v2432
      %v2434 = vpop.f32.mrf.mxu0
      %2435 = vmatprep.mubr.bf16.mxu0 0
      %2436 = vmatmul.mubr.bf16.gmra.mxu0 %v2373
      %v2437 = vpop.f32.mrf.mxu0
      %v2438 = vadd.f32 %v1686, %v2437
      %v2439 = vpop.f32.mrf.mxu0
      %v2440 = vpop.f32.mrf.mxu0
      %v2441 = vadd.f32 %v1689, %v2440
      %v2442 = vpop.f32.mrf.mxu0
      %2443 = vdwg.mxu0
      %2444 = vst.msk [vmem:[%s352] sm:$0xff] %vm1422, %v2414
      %2445 = vst.msk [vmem:[%s352 + $0x8] sm:$0xff] %vm1422, %v2417
      %2446 = vst.msk [vmem:[%s352 + $0x10] sm:$0xff] %vm1422, %v2422
      %2447 = vst.msk [vmem:[%s352 + $0x18] sm:$0xff] %vm1422, %v2425
      %2448 = vst.msk [vmem:[%s352 + $0x20] sm:$0xff] %vm1422, %v2430
      %2449 = vst.msk [vmem:[%s352 + $0x28] sm:$0xff] %vm1422, %v2433
      %2450 = vst.msk [vmem:[%s352 + $0x30] sm:$0xff] %vm1422, %v2438
      %2451 = vst.msk [vmem:[%s352 + $0x38] sm:$0xff] %vm1422, %v2441
      %p2452 = scmp.lt.s32.totalorder %s20, 1
      %s2453 = scalar_select %p2452, %s20, 1
      %s2454 = smul.addr %s2453, 8
      %s2455 = smul.addr %s2454, 8
      %s2456 = scalar_lea.vmem %s9, %s2455
      // Predicated region
      $region57: #{wide_res_block_pallas.1} parent=55 // pred_check
        %p2457 = pneg %p237
      $region58: #{wide_res_block_pallas.1} parent=55 // pred_check_branch
        %2459 = sbr.rel (%p2457) target = $region60
      $region59: #{wide_res_block_pallas.1} parent=55 // pred_region
        _
      $region60: #{wide_res_block_pallas.1} parent=55 // pred_fallthru
        _
    $region56: #{wide_res_block_pallas.1} parent=5 // pred_fallthru
      _
    %p2460 = scmp.le.s32.totalorder 2, %s15
    // Predicated region
    $region61: #{wide_res_block_pallas.1} parent=5 // pred_check
      %p2461 = pneg %p2460
    $region62: #{wide_res_block_pallas.1} parent=5 // pred_check_branch
      %2463 = sbr.rel (%p2461) target = $region64
    $region63: #{wide_res_block_pallas.1} parent=5 // pred_region
      %s2464 = ssub.s32 %s15, 2
      // Predicated region
      $region65: #{wide_res_block_pallas.1} parent=63 // pred_check
        %p2465 = pneg %p243
      $region66: #{wide_res_block_pallas.1} parent=63 // pred_check_branch
        %2467 = sbr.rel (%p2465) target = $region68
      $region67: #{wide_res_block_pallas.1} parent=63 // pred_region
        %p2468 = scmp.lt.s32.totalorder %s21, 1
        %s2469 = scalar_select %p2468, %s21, 1
        %s2470 = smul.addr %s2469, 8
        %s2471 = smul.addr %s2470, 8
        %s2472 = scalar_lea.vmem %s9, %s2471
      $region68: #{wide_res_block_pallas.1} parent=63 // pred_fallthru
        _
    $region64: #{wide_res_block_pallas.1} parent=5 // pred_fallthru
      _
  $region6: #{wide_res_block_pallas.1} parent=0 // loop_footer
    %s19 = sadd.s32 1, %s15
  $region7: #{wide_res_block_pallas.1} parent=0 // loop_footer_branch
    %14 = sbr.rel target = $region3
  $region8: #{wide_res_block_pallas.1} parent=0 // loop_exit
    _

</llo_original>
